<compile_context>
chip_gen: v6e
topology: v6e:2x2x1
jax: 0.10.0
libtpu: 0.0.40
codegen_flags: <defaults>
</compile_context>

<pallas_src>
import functools

import jax
import jax.numpy as jnp
from jax.experimental import pallas as pl
from jax.experimental.pallas import tpu as pltpu


def _argmax_step(sim, ko, iota1, width):
    """One exact max + first-index-tie-break peel step.

    `ko` (knocked-out / invalid lane mask, or None on the first step) is never
    folded back into a new `sim` array: the select feeds directly into the
    reduction, saving a full-width f32 store per peel.  Returns
    (row max, one-hot of the argmax, updated knockout mask).
    """
    neg_inf = jnp.float32(-jnp.inf)
    if ko is None:
        m = jnp.max(sim, axis=1, keepdims=True)                      # (C, 1)
        hit = sim == m
    else:
        m = jnp.max(jnp.where(ko, neg_inf, sim), axis=1, keepdims=True)
        hit = jnp.logical_and(sim == m, jnp.logical_not(ko))
    fidx = jnp.min(jnp.where(hit, iota1, width), axis=1, keepdims=True)
    onehot = iota1 == fidx                                           # (C, W)
    ko = onehot if ko is None else jnp.logical_or(ko, onehot)
    return m, onehot, ko


def _topk_single_kernel(clsfea_ref, denfea_ref, anchor_ref, out_ref, *, K):
    """Single L-tile per batch element: no carry scratch, no concat."""
    C, L = clsfea_ref.shape

    clsfea = clsfea_ref[...].astype(jnp.float32)          # (C, L)
    denfea = denfea_ref[...].astype(jnp.float32)          # (C, L)
    anchor = anchor_ref[...].astype(jnp.float32)          # (C, 1)

    # TODO(synk): GroupOp is not defined in the reference source; implemented
    # as a per-pixel channel-wise dot between clsfea and anchor_cls. Kept in
    # exact f32 on VPU/XLU so the top-k selection matches torch.topk.
    mask = jnp.sum(clsfea * anchor, axis=0, keepdims=True)           # (1, L)
    sim = denfea * mask                                              # (C, L)

    iota1 = jax.lax.broadcasted_iota(jnp.int32, (1, L), 1)

    ko = None
    # TODO(synk): for K beyond ~16, switch this unrolled peel to lax.fori_loop
    # with a (C, K) scratch written via pl.ds to bound code size.
    for _ in range(K):
        _, _, ko = _argmax_step(sim, ko, iota1, L)

    # The knockout mask is exactly the selection mask: one gather-reduce.
    ssum = jnp.sum(jnp.where(ko, clsfea, 0.0), axis=1, keepdims=True)
    out_ref[...] = (ssum * jnp.float32(1.0 / K)).astype(out_ref.dtype)


def _topk_stream_kernel(clsfea_ref, denfea_ref, anchor_ref, out_ref,
                        cand_sim_ref, cand_cls_ref, *, K, CW, rem):
    """Grid = (B, num_L_tiles).  Streams L tiles, keeps a running top-K."""
    lt = pl.program_id(1)
    n_lt = pl.num_programs(1)
    C, Lt = clsfea_ref.shape
    Wd = CW + Lt
    neg_inf = jnp.float32(-jnp.inf)

    clsfea = clsfea_ref[...].astype(jnp.float32)          # (C, Lt)
    denfea = denfea_ref[...].astype(jnp.float32)          # (C, Lt)
    anchor = anchor_ref[...].astype(jnp.float32)          # (C, 1)

    mask = jnp.sum(clsfea * anchor, axis=0, keepdims=True)           # (1, Lt)
    sim = denfea * mask                                              # (C, Lt)

    @pl.when(lt == 0)
    def _():
        cand_sim_ref[...] = jnp.full_like(cand_sim_ref, -jnp.inf)
        cand_cls_ref[...] = jnp.zeros_like(cand_cls_ref)

    # Carry block is a multiple of 128 lanes -> this concat stays lane-aligned
    # (plain copy, no XLU relayout).  Carry lanes sit first, which preserves
    # smallest-global-index tie-breaking.
    comb_sim = jnp.concatenate([cand_sim_ref[...], sim], axis=1)     # (C, Wd)
    comb_cls = jnp.concatenate([cand_cls_ref[...], clsfea], axis=1)  # (C, Wd)
    iota1 = jax.lax.broadcasted_iota(jnp.int32, (1, Wd), 1)

    # Non-last tiles: carry compact top-K (value, clsfea) candidates forward.
    @pl.when(lt < n_lt - 1)
    def _():
        ko = None
        vals, cols = [], []
        for _ in range(K):
            m, onehot, ko = _argmax_step(comb_sim, ko, iota1, Wd)
            vals.append(m)
            cols.append(jnp.sum(jnp.where(onehot, comb_cls, 0.0),
                                axis=1, keepdims=True))
        pad = CW - K
        if pad:
            vals.append(jnp.full((C, pad), -jnp.inf, jnp.float32))
            cols.append(jnp.zeros((C, pad), jnp.float32))
        cand_sim_ref[...] = jnp.concatenate(vals, axis=1)            # (C, CW)
        cand_cls_ref[...] = jnp.concatenate(cols, axis=1)            # (C, CW)

    # Last tile: only the mean of the selected clsfea is needed.  Seed the
    # knockout mask with the (static) ragged-lane mask, peel K times, then do
    # ONE gather-reduce from the accumulated knockout/selection mask.
    @pl.when(lt == n_lt - 1)
    def _():
        valid = CW + rem                     # lanes >= valid are ragged padding
        ko = (iota1 >= valid) if rem < Lt else None
        for _ in range(K):
            _, _, ko = _argmax_step(comb_sim, ko, iota1, Wd)
        sel = jnp.logical_and(ko, iota1 < valid) if rem < Lt else ko
        ssum = jnp.sum(jnp.where(sel, comb_cls, 0.0), axis=1, keepdims=True)
        out_ref[...] = (ssum * jnp.float32(1.0 / K)).astype(out_ref.dtype)


def _round_up(x, m):
    return ((x + m - 1) // m) * m


def _vmem_budget_bytes():
    """Per-generation VMEM budget with headroom for compiler scratch + DMAs."""
    cap = 64 << 20                     # conservative fallback (v7x physical)
    try:
        info = pltpu.get_tpu_info()
        cap = int(getattr(info, "vmem_capacity_bytes", cap) or cap)
    except Exception:
        pass
    # ~75% of physical VMEM: v7x (64 MiB) -> 48 MiB; v5e/v6e (128 MiB) -> 96 MiB.
    return min((cap * 3) // 4, 112 << 20)


def topk_forward(clsfea, denfea, anchor_cls, bs_mean, b, params, *,
                 lane_block=None):
    """Forward pass of `Topk` (NCHW f32 inputs)."""
    B, C, H, W = clsfea.shape
    assert b == B
    L = H * W

    # TODO(synk): `size` is data-dependent in PyTorch (read from bs_mean);
    # JAX shapes must be static, so bs_mean is consumed as host values and each
    # distinct value recompiles.
    a2 = 384 * 576 / H / W
    size = int(float(bs_mean[0][0]) * float(bs_mean[0][1]) // a2)
    size = max(size, 3)
    assert size <= L, "topk size must not exceed H*W"

    # Lane-tile cap derived from the VMEM budget: ~16 live f32 (C, lane) slabs
    # (2x double-buffered inputs + peel temporaries: sim, comb_sim, comb_cls,
    # masks, onehot, ...).
    budget = _vmem_budget_bytes()
    bytes_per_lane = 16 * C * 4
    lt_cap = max(128, (budget // bytes_per_lane) // 128 * 128)
    if lane_block is not None:
        lt_cap = min(lt_cap, max(128, (lane_block // 128) * 128))

    clsfea_f = clsfea.reshape(B, C, L).astype(jnp.float32)
    denfea_f = denfea.reshape(B, C, L).astype(jnp.float32)
    anchor = anchor_cls.reshape(B, C, 1).astype(jnp.float32)

    if L <= lt_cap:
        # -------- single-tile kernel: whole L per batch element ------------
        vmem_limit = min(budget, max(16 << 20, 12 * C * L * 4 + (2 << 20)))
        sel_mean = pl.pallas_call(
            functools.partial(_topk_single_kernel, K=size),
            out_shape=jax.ShapeDtypeStruct((B, C, 1), jnp.float32),
            grid=(B,),
            in_specs=[
                pl.BlockSpec((None, C, L), lambda bb: (bb, 0, 0)),   # clsfea
                pl.BlockSpec((None, C, L), lambda bb: (bb, 0, 0)),   # denfea
                pl.BlockSpec((None, C, 1), lambda bb: (bb, 0, 0)),   # anchor
            ],
            out_specs=pl.BlockSpec((None, C, 1), lambda bb: (bb, 0, 0)),
            compiler_params=pltpu.CompilerParams(
                dimension_semantics=("parallel",),
                vmem_limit_bytes=vmem_limit),
        )(clsfea_f, denfea_f, anchor)
    else:
        # -------- streaming kernel: bounded VMEM, running top-K ------------
        Lt = max(lt_cap, _round_up(size, 128))     # keep Lt >= K for the carry
        n_lt = pl.cdiv(L, Lt)
        CW = _round_up(size, 128)                  # lane-aligned carry width
        rem = L - (n_lt - 1) * Lt                  # lanes in the last tile
        vmem_limit = min(budget, max(16 << 20, 16 * C * Lt * 4 + (2 << 20)))
        sel_mean = pl.pallas_call(
            functools.partial(_topk_stream_kernel, K=size, CW=CW, rem=rem),
            out_shape=jax.ShapeDtypeStruct((B, C, 1), jnp.float32),
            grid=(B, n_lt),
            in_specs=[
                pl.BlockSpec((None, C, Lt), lambda bb, ll: (bb, 0, ll)),
                pl.BlockSpec((None, C, Lt), lambda bb, ll: (bb, 0, ll)),
                pl.BlockSpec((None, C, 1), lambda bb, ll: (bb, 0, 0)),
            ],
            out_specs=pl.BlockSpec((None, C, 1), lambda bb, ll: (bb, 0, 0)),
            scratch_shapes=[
                pltpu.VMEM((C, CW), jnp.float32),   # carried top-K sim values
                pltpu.VMEM((C, CW), jnp.float32),   # carried top-K clsfea vals
            ],
            compiler_params=pltpu.CompilerParams(
                dimension_semantics=("parallel", "arbitrary"),
                vmem_limit_bytes=vmem_limit),
        )(clsfea_f, denfea_f, anchor)

    sel_mean = sel_mean[..., 0]                                       # (B, C)

    # Hoisted Linear layers as B-batched GEMMs (mean/Linear commute exactly).
    hi = jax.lax.Precision.HIGHEST
    acls1 = jnp.dot(sel_mean, params["w_emb"].T, precision=hi) + params["b_emb"]
    cat = jnp.concatenate(
        [anchor_cls.reshape(B, C).astype(jnp.float32), acls1], axis=1)
    out = jnp.dot(cat, params["w_emb2"].T, precision=hi) + params["b_emb2"]
    return out.reshape(B, C, 1, 1)


def reference_forward(clsfea, denfea, anchor_cls, bs_mean, b, params):
    """Pure-JAX reference mirroring the PyTorch forward."""
    B, C, H, W = clsfea.shape
    L = H * W
    a2 = 384 * 576 / H / W
    size = max(int(float(bs_mean[0][0]) * float(bs_mean[0][1]) // a2), 3)

    hi = jax.lax.Precision.HIGHEST
    mask = jnp.sum(clsfea * anchor_cls, axis=1, keepdims=True)   # GroupOp stand-in
    sim = denfea * mask
    top = sim.reshape(B, C, L)
    _, idx = jax.lax.top_k(top, size)                            # (B, C, size)
    top1 = jnp.take_along_axis(clsfea.reshape(B, C, L), idx, axis=2)
    top1 = jnp.swapaxes(top1, 1, 2)                              # (B, size, C)
    emb_out = jnp.einsum("bkc,dc->bkd", top1, params["w_emb"],
                         precision=hi) + params["b_emb"]
    acls1 = emb_out.mean(axis=1)                                 # (B, C)
    cat = jnp.concatenate([anchor_cls.reshape(B, C), acls1], axis=1)
    out = jnp.dot(cat, params["w_emb2"].T, precision=hi) + params["b_emb2"]
    return out.reshape(B, C, 1, 1)


if __name__ == "__main__":
    key = jax.random.PRNGKey(0)
    b, C, H, W = 2, 32, 16, 16          # qk_dim = 32, L = 256
    k1, k2, k3, k4, k5, k6, k7 = jax.random.split(key, 7)

    clsfea = jax.random.normal(k1, (b, C, H, W), jnp.float32)
    denfea = jax.random.normal(k2, (b, C, H, W), jnp.float32)
    anchor_cls = jax.random.normal(k3, (b, C, 1, 1), jnp.float32)
    bs_mean = [[84.0, 84.0]]            # -> size = int(84*84 // 864) = 8

    kk = 1.0 / (C ** 0.5)
    kk2 = 1.0 / ((2 * C) ** 0.5)
    params = {
        "w_emb": jax.random.uniform(k4, (C, C), jnp.float32, -kk, kk),
        "b_emb": jax.random.uniform(k5, (C,), jnp.float32, -kk, kk),
        "w_emb2": jax.random.uniform(k6, (C, 2 * C), jnp.float32, -kk2, kk2),
        "b_emb2": jax.random.uniform(k7, (C,), jnp.float32, -kk2, kk2),
    }

    ref = reference_forward(clsfea, denfea, anchor_cls, bs_mean, b, params)

    # Path 1: whole-L block per batch element (single-tile kernel).
    out1 = topk_forward(clsfea, denfea, anchor_cls, bs_mean, b, params)
    out1 = jax.block_until_ready(out1)
    assert out1.shape == (b, C, 1, 1), out1.shape
    assert jnp.allclose(out1, ref, atol=1e-4, rtol=1e-4), (
        "max abs err:", float(jnp.max(jnp.abs(out1 - ref))))

    # Path 2: force lane tiling (streaming top-K merge across 2 L-tiles).
    out2 = topk_forward(clsfea, denfea, anchor_cls, bs_mean, b, params,
                        lane_block=128)
    out2 = jax.block_until_ready(out2)
    assert jnp.allclose(out2, ref, atol=1e-4, rtol=1e-4), (
        "max abs err (tiled):", float(jnp.max(jnp.abs(out2 - ref))))

    print("KERNEL_OK")
</pallas_src>

<mosaic_0001>
module attributes {stable_mosaic.version = 11 : i64} {
  func.func @_topk_single_kernel(%arg0: i32, %arg1: memref<1x32x256xf32, #tpu.memory_space<vmem>>, %arg2: memref<1x32x256xf32, #tpu.memory_space<vmem>>, %arg3: memref<1x32x1xf32, #tpu.memory_space<vmem>>, %arg4: memref<1x32x1xf32, #tpu.memory_space<vmem>>) attributes {dimension_semantics = [#tpu.dimension_semantics<parallel>], iteration_bounds = array<i64: 2>, scalar_prefetch = 0 : i64, scratch_operands = 0 : i64, tpu.core_type = #tpu.core_type<tc>, window_params = [{transform_indices = @transform_0, window_bounds = array<i64: 1, 32, 256>}, {transform_indices = @transform_1, window_bounds = array<i64: 1, 32, 256>}, {transform_indices = @transform_2, window_bounds = array<i64: 1, 32, 1>}, {transform_indices = @transform_3, window_bounds = array<i64: 1, 32, 1>}]} {
    %c0 = arith.constant 0 : index
    %c0_0 = arith.constant 0 : index
    %c0_1 = arith.constant 0 : index
    %0 = vector.load %arg1[%c0, %c0_0, %c0_1] : memref<1x32x256xf32, #tpu.memory_space<vmem>>, vector<1x32x256xf32>
    %1 = vector.shape_cast %0 : vector<1x32x256xf32> to vector<32x256xf32>
    %c0_2 = arith.constant 0 : index
    %c0_3 = arith.constant 0 : index
    %c0_4 = arith.constant 0 : index
    %2 = vector.load %arg2[%c0_2, %c0_3, %c0_4] : memref<1x32x256xf32, #tpu.memory_space<vmem>>, vector<1x32x256xf32>
    %3 = vector.shape_cast %2 : vector<1x32x256xf32> to vector<32x256xf32>
    %c0_5 = arith.constant 0 : index
    %c0_6 = arith.constant 0 : index
    %c0_7 = arith.constant 0 : index
    %4 = vector.load %arg3[%c0_5, %c0_6, %c0_7] : memref<1x32x1xf32, #tpu.memory_space<vmem>>, vector<1x32x1xf32>
    %5 = vector.shape_cast %4 : vector<1x32x1xf32> to vector<32x1xf32>
    %6 = vector.broadcast %5 : vector<32x1xf32> to vector<32x256xf32>
    %7 = arith.mulf %1, %6 : vector<32x256xf32>
    %cst = arith.constant dense<0.000000e+00> : vector<256xf32>
    %8 = vector.multi_reduction <add>, %7, %cst [0] : vector<32x256xf32> to vector<256xf32>
    %9 = vector.shape_cast %8 : vector<256xf32> to vector<1x256xf32>
    %10 = vector.broadcast %9 : vector<1x256xf32> to vector<32x256xf32>
    %11 = arith.mulf %3, %10 : vector<32x256xf32>
    %12 = tpu.iota {dimensions = array<i32: 1>} : vector<1x256xi32>
    %cst_8 = arith.constant dense<0xFF800000> : vector<32xf32>
    %13 = vector.multi_reduction <maximumf>, %11, %cst_8 [1] : vector<32x256xf32> to vector<32xf32>
    %14 = vector.shape_cast %13 : vector<32xf32> to vector<32x1xf32>
    %15 = vector.broadcast %14 : vector<32x1xf32> to vector<32x256xf32>
    %16 = arith.cmpf oeq, %11, %15 : vector<32x256xf32>
    %c256_i32 = arith.constant 256 : i32
    %17 = vector.shape_cast %12 : vector<1x256xi32> to vector<1x256xi32>
    %18 = vector.broadcast %17 : vector<1x256xi32> to vector<32x256xi32>
    %19 = vector.broadcast %c256_i32 : i32 to vector<32x256xi32>
    %20 = arith.select %16, %18, %19 : vector<32x256xi1>, vector<32x256xi32>
    %cst_9 = arith.constant dense<2147483647> : vector<32xi32>
    %21 = vector.multi_reduction <minsi>, %20, %cst_9 [1] : vector<32x256xi32> to vector<32xi32>
    %22 = vector.shape_cast %21 : vector<32xi32> to vector<32x1xi32>
    %23 = vector.broadcast %12 : vector<1x256xi32> to vector<32x256xi32>
    %24 = vector.broadcast %22 : vector<32x1xi32> to vector<32x256xi32>
    %25 = arith.cmpi eq, %23, %24 : vector<32x256xi32>
    %cst_10 = arith.constant 0xFF800000 : f32
    %26 = vector.broadcast %cst_10 : f32 to vector<32x256xf32>
    %27 = arith.select %25, %26, %11 : vector<32x256xi1>, vector<32x256xf32>
    %cst_11 = arith.constant dense<0xFF800000> : vector<32xf32>
    %28 = vector.multi_reduction <maximumf>, %27, %cst_11 [1] : vector<32x256xf32> to vector<32xf32>
    %29 = vector.shape_cast %28 : vector<32xf32> to vector<32x1xf32>
    %30 = vector.broadcast %29 : vector<32x1xf32> to vector<32x256xf32>
    %31 = arith.cmpf oeq, %11, %30 : vector<32x256xf32>
    %cst_12 = arith.constant dense<true> : vector<32x256xi1>
    %32 = arith.xori %25, %cst_12 : vector<32x256xi1>
    %33 = arith.andi %31, %32 : vector<32x256xi1>
    %c256_i32_13 = arith.constant 256 : i32
    %34 = vector.shape_cast %12 : vector<1x256xi32> to vector<1x256xi32>
    %35 = vector.broadcast %34 : vector<1x256xi32> to vector<32x256xi32>
    %36 = vector.broadcast %c256_i32_13 : i32 to vector<32x256xi32>
    %37 = arith.select %33, %35, %36 : vector<32x256xi1>, vector<32x256xi32>
    %cst_14 = arith.constant dense<2147483647> : vector<32xi32>
    %38 = vector.multi_reduction <minsi>, %37, %cst_14 [1] : vector<32x256xi32> to vector<32xi32>
    %39 = vector.shape_cast %38 : vector<32xi32> to vector<32x1xi32>
    %40 = vector.broadcast %12 : vector<1x256xi32> to vector<32x256xi32>
    %41 = vector.broadcast %39 : vector<32x1xi32> to vector<32x256xi32>
    %42 = arith.cmpi eq, %40, %41 : vector<32x256xi32>
    %43 = arith.ori %25, %42 : vector<32x256xi1>
    %cst_15 = arith.constant 0xFF800000 : f32
    %44 = vector.broadcast %cst_15 : f32 to vector<32x256xf32>
    %45 = arith.select %43, %44, %11 : vector<32x256xi1>, vector<32x256xf32>
    %cst_16 = arith.constant dense<0xFF800000> : vector<32xf32>
    %46 = vector.multi_reduction <maximumf>, %45, %cst_16 [1] : vector<32x256xf32> to vector<32xf32>
    %47 = vector.shape_cast %46 : vector<32xf32> to vector<32x1xf32>
    %48 = vector.broadcast %47 : vector<32x1xf32> to vector<32x256xf32>
    %49 = arith.cmpf oeq, %11, %48 : vector<32x256xf32>
    %cst_17 = arith.constant dense<true> : vector<32x256xi1>
    %50 = arith.xori %43, %cst_17 : vector<32x256xi1>
    %51 = arith.andi %49, %50 : vector<32x256xi1>
    %c256_i32_18 = arith.constant 256 : i32
    %52 = vector.shape_cast %12 : vector<1x256xi32> to vector<1x256xi32>
    %53 = vector.broadcast %52 : vector<1x256xi32> to vector<32x256xi32>
    %54 = vector.broadcast %c256_i32_18 : i32 to vector<32x256xi32>
    %55 = arith.select %51, %53, %54 : vector<32x256xi1>, vector<32x256xi32>
    %cst_19 = arith.constant dense<2147483647> : vector<32xi32>
    %56 = vector.multi_reduction <minsi>, %55, %cst_19 [1] : vector<32x256xi32> to vector<32xi32>
    %57 = vector.shape_cast %56 : vector<32xi32> to vector<32x1xi32>
    %58 = vector.broadcast %12 : vector<1x256xi32> to vector<32x256xi32>
    %59 = vector.broadcast %57 : vector<32x1xi32> to vector<32x256xi32>
    %60 = arith.cmpi eq, %58, %59 : vector<32x256xi32>
    %61 = arith.ori %43, %60 : vector<32x256xi1>
    %cst_20 = arith.constant 0xFF800000 : f32
    %62 = vector.broadcast %cst_20 : f32 to vector<32x256xf32>
    %63 = arith.select %61, %62, %11 : vector<32x256xi1>, vector<32x256xf32>
    %cst_21 = arith.constant dense<0xFF800000> : vector<32xf32>
    %64 = vector.multi_reduction <maximumf>, %63, %cst_21 [1] : vector<32x256xf32> to vector<32xf32>
    %65 = vector.shape_cast %64 : vector<32xf32> to vector<32x1xf32>
    %66 = vector.broadcast %65 : vector<32x1xf32> to vector<32x256xf32>
    %67 = arith.cmpf oeq, %11, %66 : vector<32x256xf32>
    %cst_22 = arith.constant dense<true> : vector<32x256xi1>
    %68 = arith.xori %61, %cst_22 : vector<32x256xi1>
    %69 = arith.andi %67, %68 : vector<32x256xi1>
    %c256_i32_23 = arith.constant 256 : i32
    %70 = vector.shape_cast %12 : vector<1x256xi32> to vector<1x256xi32>
    %71 = vector.broadcast %70 : vector<1x256xi32> to vector<32x256xi32>
    %72 = vector.broadcast %c256_i32_23 : i32 to vector<32x256xi32>
    %73 = arith.select %69, %71, %72 : vector<32x256xi1>, vector<32x256xi32>
    %cst_24 = arith.constant dense<2147483647> : vector<32xi32>
    %74 = vector.multi_reduction <minsi>, %73, %cst_24 [1] : vector<32x256xi32> to vector<32xi32>
    %75 = vector.shape_cast %74 : vector<32xi32> to vector<32x1xi32>
    %76 = vector.broadcast %12 : vector<1x256xi32> to vector<32x256xi32>
    %77 = vector.broadcast %75 : vector<32x1xi32> to vector<32x256xi32>
    %78 = arith.cmpi eq, %76, %77 : vector<32x256xi32>
    %79 = arith.ori %61, %78 : vector<32x256xi1>
    %cst_25 = arith.constant 0xFF800000 : f32
    %80 = vector.broadcast %cst_25 : f32 to vector<32x256xf32>
    %81 = arith.select %79, %80, %11 : vector<32x256xi1>, vector<32x256xf32>
    %cst_26 = arith.constant dense<0xFF800000> : vector<32xf32>
    %82 = vector.multi_reduction <maximumf>, %81, %cst_26 [1] : vector<32x256xf32> to vector<32xf32>
    %83 = vector.shape_cast %82 : vector<32xf32> to vector<32x1xf32>
    %84 = vector.broadcast %83 : vector<32x1xf32> to vector<32x256xf32>
    %85 = arith.cmpf oeq, %11, %84 : vector<32x256xf32>
    %cst_27 = arith.constant dense<true> : vector<32x256xi1>
    %86 = arith.xori %79, %cst_27 : vector<32x256xi1>
    %87 = arith.andi %85, %86 : vector<32x256xi1>
    %c256_i32_28 = arith.constant 256 : i32
    %88 = vector.shape_cast %12 : vector<1x256xi32> to vector<1x256xi32>
    %89 = vector.broadcast %88 : vector<1x256xi32> to vector<32x256xi32>
    %90 = vector.broadcast %c256_i32_28 : i32 to vector<32x256xi32>
    %91 = arith.select %87, %89, %90 : vector<32x256xi1>, vector<32x256xi32>
    %cst_29 = arith.constant dense<2147483647> : vector<32xi32>
    %92 = vector.multi_reduction <minsi>, %91, %cst_29 [1] : vector<32x256xi32> to vector<32xi32>
    %93 = vector.shape_cast %92 : vector<32xi32> to vector<32x1xi32>
    %94 = vector.broadcast %12 : vector<1x256xi32> to vector<32x256xi32>
    %95 = vector.broadcast %93 : vector<32x1xi32> to vector<32x256xi32>
    %96 = arith.cmpi eq, %94, %95 : vector<32x256xi32>
    %97 = arith.ori %79, %96 : vector<32x256xi1>
    %cst_30 = arith.constant 0xFF800000 : f32
    %98 = vector.broadcast %cst_30 : f32 to vector<32x256xf32>
    %99 = arith.select %97, %98, %11 : vector<32x256xi1>, vector<32x256xf32>
    %cst_31 = arith.constant dense<0xFF800000> : vector<32xf32>
    %100 = vector.multi_reduction <maximumf>, %99, %cst_31 [1] : vector<32x256xf32> to vector<32xf32>
    %101 = vector.shape_cast %100 : vector<32xf32> to vector<32x1xf32>
    %102 = vector.broadcast %101 : vector<32x1xf32> to vector<32x256xf32>
    %103 = arith.cmpf oeq, %11, %102 : vector<32x256xf32>
    %cst_32 = arith.constant dense<true> : vector<32x256xi1>
    %104 = arith.xori %97, %cst_32 : vector<32x256xi1>
    %105 = arith.andi %103, %104 : vector<32x256xi1>
    %c256_i32_33 = arith.constant 256 : i32
    %106 = vector.shape_cast %12 : vector<1x256xi32> to vector<1x256xi32>
    %107 = vector.broadcast %106 : vector<1x256xi32> to vector<32x256xi32>
    %108 = vector.broadcast %c256_i32_33 : i32 to vector<32x256xi32>
    %109 = arith.select %105, %107, %108 : vector<32x256xi1>, vector<32x256xi32>
    %cst_34 = arith.constant dense<2147483647> : vector<32xi32>
    %110 = vector.multi_reduction <minsi>, %109, %cst_34 [1] : vector<32x256xi32> to vector<32xi32>
    %111 = vector.shape_cast %110 : vector<32xi32> to vector<32x1xi32>
    %112 = vector.broadcast %12 : vector<1x256xi32> to vector<32x256xi32>
    %113 = vector.broadcast %111 : vector<32x1xi32> to vector<32x256xi32>
    %114 = arith.cmpi eq, %112, %113 : vector<32x256xi32>
    %115 = arith.ori %97, %114 : vector<32x256xi1>
    %cst_35 = arith.constant 0xFF800000 : f32
    %116 = vector.broadcast %cst_35 : f32 to vector<32x256xf32>
    %117 = arith.select %115, %116, %11 : vector<32x256xi1>, vector<32x256xf32>
    %cst_36 = arith.constant dense<0xFF800000> : vector<32xf32>
    %118 = vector.multi_reduction <maximumf>, %117, %cst_36 [1] : vector<32x256xf32> to vector<32xf32>
    %119 = vector.shape_cast %118 : vector<32xf32> to vector<32x1xf32>
    %120 = vector.broadcast %119 : vector<32x1xf32> to vector<32x256xf32>
    %121 = arith.cmpf oeq, %11, %120 : vector<32x256xf32>
    %cst_37 = arith.constant dense<true> : vector<32x256xi1>
    %122 = arith.xori %115, %cst_37 : vector<32x256xi1>
    %123 = arith.andi %121, %122 : vector<32x256xi1>
    %c256_i32_38 = arith.constant 256 : i32
    %124 = vector.shape_cast %12 : vector<1x256xi32> to vector<1x256xi32>
    %125 = vector.broadcast %124 : vector<1x256xi32> to vector<32x256xi32>
    %126 = vector.broadcast %c256_i32_38 : i32 to vector<32x256xi32>
    %127 = arith.select %123, %125, %126 : vector<32x256xi1>, vector<32x256xi32>
    %cst_39 = arith.constant dense<2147483647> : vector<32xi32>
    %128 = vector.multi_reduction <minsi>, %127, %cst_39 [1] : vector<32x256xi32> to vector<32xi32>
    %129 = vector.shape_cast %128 : vector<32xi32> to vector<32x1xi32>
    %130 = vector.broadcast %12 : vector<1x256xi32> to vector<32x256xi32>
    %131 = vector.broadcast %129 : vector<32x1xi32> to vector<32x256xi32>
    %132 = arith.cmpi eq, %130, %131 : vector<32x256xi32>
    %133 = arith.ori %115, %132 : vector<32x256xi1>
    %cst_40 = arith.constant 0xFF800000 : f32
    %134 = vector.broadcast %cst_40 : f32 to vector<32x256xf32>
    %135 = arith.select %133, %134, %11 : vector<32x256xi1>, vector<32x256xf32>
    %cst_41 = arith.constant dense<0xFF800000> : vector<32xf32>
    %136 = vector.multi_reduction <maximumf>, %135, %cst_41 [1] : vector<32x256xf32> to vector<32xf32>
    %137 = vector.shape_cast %136 : vector<32xf32> to vector<32x1xf32>
    %138 = vector.broadcast %137 : vector<32x1xf32> to vector<32x256xf32>
    %139 = arith.cmpf oeq, %11, %138 : vector<32x256xf32>
    %cst_42 = arith.constant dense<true> : vector<32x256xi1>
    %140 = arith.xori %133, %cst_42 : vector<32x256xi1>
    %141 = arith.andi %139, %140 : vector<32x256xi1>
    %c256_i32_43 = arith.constant 256 : i32
    %142 = vector.shape_cast %12 : vector<1x256xi32> to vector<1x256xi32>
    %143 = vector.broadcast %142 : vector<1x256xi32> to vector<32x256xi32>
    %144 = vector.broadcast %c256_i32_43 : i32 to vector<32x256xi32>
    %145 = arith.select %141, %143, %144 : vector<32x256xi1>, vector<32x256xi32>
    %cst_44 = arith.constant dense<2147483647> : vector<32xi32>
    %146 = vector.multi_reduction <minsi>, %145, %cst_44 [1] : vector<32x256xi32> to vector<32xi32>
    %147 = vector.shape_cast %146 : vector<32xi32> to vector<32x1xi32>
    %148 = vector.broadcast %12 : vector<1x256xi32> to vector<32x256xi32>
    %149 = vector.broadcast %147 : vector<32x1xi32> to vector<32x256xi32>
    %150 = arith.cmpi eq, %148, %149 : vector<32x256xi32>
    %151 = arith.ori %133, %150 : vector<32x256xi1>
    %cst_45 = arith.constant 0.000000e+00 : f32
    %152 = vector.broadcast %cst_45 : f32 to vector<32x256xf32>
    %153 = arith.select %151, %1, %152 : vector<32x256xi1>, vector<32x256xf32>
    %cst_46 = arith.constant dense<0.000000e+00> : vector<32xf32>
    %154 = vector.multi_reduction <add>, %153, %cst_46 [1] : vector<32x256xf32> to vector<32xf32>
    %155 = vector.shape_cast %154 : vector<32xf32> to vector<32x1xf32>
    %cst_47 = arith.constant 1.250000e-01 : f32
    %156 = vector.broadcast %cst_47 : f32 to vector<32x1xf32>
    %157 = arith.mulf %155, %156 : vector<32x1xf32>
    %c0_48 = arith.constant 0 : index
    %c0_49 = arith.constant 0 : index
    %c0_50 = arith.constant 0 : index
    %158 = vector.load %arg4[%c0_48, %c0_49, %c0_50] : memref<1x32x1xf32, #tpu.memory_space<vmem>>, vector<1x32x1xf32>
    %159 = vector.shape_cast %158 : vector<1x32x1xf32> to vector<32x1xf32>
    %160 = vector.shape_cast %157 : vector<32x1xf32> to vector<1x32x1xf32>
    tpu.vector_store %arg4[%c0_48, %c0_49, %c0_50], %160 {strides = array<i32>} : memref<1x32x1xf32, #tpu.memory_space<vmem>>, vector<1x32x1xf32>,
    return
  }
  func.func @transform_0(%arg0: i32) -> (i32, i32, i32) {
    %c0_i32 = arith.constant 0 : i32
    %c0_i32_0 = arith.constant 0 : i32
    %c0_i32_1 = arith.constant 0 : i32
    return %arg0, %c0_i32, %c0_i32_0 : i32, i32, i32
  }
  func.func @transform_1(%arg0: i32) -> (i32, i32, i32) {
    %c0_i32 = arith.constant 0 : i32
    %c0_i32_0 = arith.constant 0 : i32
    %c0_i32_1 = arith.constant 0 : i32
    return %arg0, %c0_i32, %c0_i32_0 : i32, i32, i32
  }
  func.func @transform_2(%arg0: i32) -> (i32, i32, i32) {
    %c0_i32 = arith.constant 0 : i32
    %c0_i32_0 = arith.constant 0 : i32
    %c0_i32_1 = arith.constant 0 : i32
    return %arg0, %c0_i32, %c0_i32_0 : i32, i32, i32
  }
  func.func @transform_3(%arg0: i32) -> (i32, i32, i32) {
    %c0_i32 = arith.constant 0 : i32
    %c0_i32_0 = arith.constant 0 : i32
    %c0_i32_1 = arith.constant 0 : i32
    return %arg0, %c0_i32, %c0_i32_0 : i32, i32, i32
  }
}

</mosaic_0001>

<llo_original>
// kernel: tpu_custom_call.1
$region0: #{tpu_custom_call.1}
  #allocation0 [shape = 'u32[]', space=smem, size = 0x4, offset = 0x4, fixed_abs, tag = 'smem constant byte address 0x4 - core index']
  #allocation1 [shape = 'u32[144,128]{1,0:T(1,128)}', space=vmem, size = 0x12000, scoped, tag = 'internal scratch']
  %s0 = inlined_call_operand.hbm [shape: f32[2,32,256], index: 0, kind: input, shape index: {}]
  %s1 = inlined_call_operand.hbm [shape: f32[2,32,256], index: 1, kind: input, shape index: {}]
  %s2 = inlined_call_operand.vmem [shape: f32[2,32,1], index: 2, kind: input, shape index: {}]
  %s3 = inlined_call_operand.vmem [shape: f32[2,32,1], index: 3, kind: output, shape index: {}]
  %s4 = sld [smem:[#allocation0]]
  $region53: #{tpu_custom_call.1} parent=0
    _
  %s6 = ssub.s32 1, %s4
  %s7 = scalar_select 0, %s6, %s4
  $region1: #{tpu_custom_call.1} parent=0
    #allocation2 [shape = 'u8[65536]{0}', space=vmem, size = 0x10000, scoped, tag = 'input window, operand 0']
    #allocation3 [shape = 's32[2]{0}', space=sflag, size = 0x8, scoped, tag = 'scoped memory for tpu_custom_call.1']
    #allocation4 [shape = 'u8[65536]{0}', space=vmem, size = 0x10000, scoped, tag = 'input window, operand 1']
    #allocation5 [shape = 's32[2]{0}', space=sflag, size = 0x8, scoped, tag = 'scoped memory for tpu_custom_call.1']
    %8 = vsyncpa [#allocation3], 0
    %s9 = scalar_lea.sflag [#allocation3], 1
    %10 = vsyncpa %s9, 0
    %11 = vsyncpa [#allocation5], 0
    %s12 = scalar_lea.sflag [#allocation5], 1
    %13 = vsyncpa %s12, 0
    loop: start=0, step=1, limit=4
    $region2: #{tpu_custom_call.1} parent=1 // loop_pre_header
      _
    $region3: #{tpu_custom_call.1} parent=1 // loop_header
      %s15 = sphi 0, %s19
      %p16 = scmp.ge.s32.totalorder %s15, 4
      %s25 = sphi 0, %s27
      %s28 = sphi 0, %s25
      %s29 = sphi 0, %s28
      %s45 = sphi 0, %s29
      %s51 = sphi 0, %s53
      %s54 = sphi 0, %s51
      %s55 = sphi 0, %s54
      %s71 = sphi 0, %s55
      %s77 = sphi 0, %s79
      %s80 = sphi 0, %s77
      %s81 = sphi 0, %s80
      %s97 = sphi 0, %s81
      %s103 = sphi 0, %s105
      %s106 = sphi 0, %s103
      %s107 = sphi 0, %s106
      %s123 = sphi 0, %s107
    $region4: #{tpu_custom_call.1} parent=1 // loop_header_branch
      %18 = sbr.rel (%p16) target = $region8
    $region5: #{tpu_custom_call.1} parent=1 // loop_body
      %s20 = ssub.s32 %s15, 1
      %s21 = ssub.s32 %s15, 2
      %s22 = sadd.s32 %s15, 1
      %s23 = ssub.s32 %s15, %s22
      %p24 = scmp.eq.s32.totalorder %s23, 0
      %s26 = sadd.s32 %s25, 1
      %s27 = scalar_select %p24, %s25, %s26
      %p30 = pneg %p24
      %p31 = scmp.eq.s32.totalorder %s15, 1
      %p32 = por %p30, %p31
      %p33 = scmp.ne.s32.totalorder %s25, %s28
      %p34 = scmp.eq.s32.totalorder %s15, 0
      %p35 = por %p33, %p34
      %p36 = scmp.ne.s32.totalorder %s25, %s28
      %p37 = scmp.eq.s32.totalorder %s20, 1
      %p38 = por %p36, %p37
      %p39 = scmp.ne.s32.totalorder %s28, %s29
      %p40 = scmp.eq.s32.totalorder %s20, 0
      %p41 = por %p39, %p40
      %p42 = scmp.ne.s32.totalorder %s28, %s29
      %p43 = scmp.eq.s32.totalorder %s21, 1
      %p44 = por %p42, %p43
      %p46 = scmp.ne.s32.totalorder %s29, %s45
      %p47 = scmp.eq.s32.totalorder %s21, 0
      %p48 = por %p46, %p47
      %s49 = ssub.s32 %s15, %s22
      %p50 = scmp.eq.s32.totalorder %s49, 0
      %s52 = sadd.s32 %s51, 1
      %s53 = scalar_select %p50, %s51, %s52
      %p56 = pneg %p50
      %p57 = scmp.eq.s32.totalorder %s15, 1
      %p58 = por %p56, %p57
      %p59 = scmp.ne.s32.totalorder %s51, %s54
      %p60 = scmp.eq.s32.totalorder %s15, 0
      %p61 = por %p59, %p60
      %p62 = scmp.ne.s32.totalorder %s51, %s54
      %p63 = scmp.eq.s32.totalorder %s20, 1
      %p64 = por %p62, %p63
      %p65 = scmp.ne.s32.totalorder %s54, %s55
      %p66 = scmp.eq.s32.totalorder %s20, 0
      %p67 = por %p65, %p66
      %p68 = scmp.ne.s32.totalorder %s54, %s55
      %p69 = scmp.eq.s32.totalorder %s21, 1
      %p70 = por %p68, %p69
      %p72 = scmp.ne.s32.totalorder %s55, %s71
      %p73 = scmp.eq.s32.totalorder %s21, 0
      %p74 = por %p72, %p73
      %s75 = ssub.s32 %s15, %s22
      %p76 = scmp.eq.s32.totalorder %s75, 0
      %s78 = sadd.s32 %s77, 1
      %s79 = scalar_select %p76, %s77, %s78
      %p82 = pneg %p76
      %p83 = scmp.eq.s32.totalorder %s15, 1
      %p84 = por %p82, %p83
      %p85 = scmp.ne.s32.totalorder %s77, %s80
      %p86 = scmp.eq.s32.totalorder %s15, 0
      %p87 = por %p85, %p86
      %p88 = scmp.ne.s32.totalorder %s77, %s80
      %p89 = scmp.eq.s32.totalorder %s20, 1
      %p90 = por %p88, %p89
      %p91 = scmp.ne.s32.totalorder %s80, %s81
      %p92 = scmp.eq.s32.totalorder %s20, 0
      %p93 = por %p91, %p92
      %p94 = scmp.ne.s32.totalorder %s80, %s81
      %p95 = scmp.eq.s32.totalorder %s21, 1
      %p96 = por %p94, %p95
      %p98 = scmp.ne.s32.totalorder %s81, %s97
      %p99 = scmp.eq.s32.totalorder %s21, 0
      %p100 = por %p98, %p99
      %s101 = ssub.s32 %s15, %s22
      %p102 = scmp.eq.s32.totalorder %s101, 0
      %s104 = sadd.s32 %s103, 1
      %s105 = scalar_select %p102, %s103, %s104
      %p108 = pneg %p102
      %p109 = scmp.eq.s32.totalorder %s15, 1
      %p110 = por %p108, %p109
      %p111 = scmp.ne.s32.totalorder %s103, %s106
      %p112 = scmp.eq.s32.totalorder %s15, 0
      %p113 = por %p111, %p112
      %p114 = scmp.ne.s32.totalorder %s103, %s106
      %p115 = scmp.eq.s32.totalorder %s20, 1
      %p116 = por %p114, %p115
      %p117 = scmp.ne.s32.totalorder %s106, %s107
      %p118 = scmp.eq.s32.totalorder %s20, 0
      %p119 = por %p117, %p118
      %p120 = scmp.ne.s32.totalorder %s106, %s107
      %p121 = scmp.eq.s32.totalorder %s21, 1
      %p122 = por %p120, %p121
      %p124 = scmp.ne.s32.totalorder %s107, %s123
      %p125 = scmp.eq.s32.totalorder %s21, 0
      %p126 = por %p124, %p125
      %p127 = scmp.le.s32.totalorder 1, %s15
      %p128 = scmp.lt.s32.totalorder %s15, 3
      %p129 = pnand %p127, %p128
      %p130 = pneg %p129
      // Predicated region
      $region9: #{tpu_custom_call.1} parent=5 // pred_check
        _
      $region10: #{tpu_custom_call.1} parent=5 // pred_check_branch
        %132 = sbr.rel (%p129) target = $region12
      $region11: #{tpu_custom_call.1} parent=5 // pred_region
        %s133 = ssub.s32 %s15, 1
      $region12: #{tpu_custom_call.1} parent=5 // pred_fallthru
        _
      %p134 = scmp.lt.s32.totalorder %s15, 2
      // Predicated region
      $region13: #{tpu_custom_call.1} parent=5 // pred_check
        %p135 = pneg %p134
      $region14: #{tpu_custom_call.1} parent=5 // pred_check_branch
        %137 = sbr.rel (%p135) target = $region16
      $region15: #{tpu_custom_call.1} parent=5 // pred_region
        // Predicated region
        $region17: #{tpu_custom_call.1} parent=15 // pred_check
          %p138 = pneg %p35
        $region18: #{tpu_custom_call.1} parent=15 // pred_check_branch
          %140 = sbr.rel (%p138) target = $region20
        $region19: #{tpu_custom_call.1} parent=15 // pred_region
          %s141 = sand.u32 %s25, 1
          %s142 = scalar_lea.sflag [#allocation3], %s141
          %s143 = sand.u32 %s25, 1
          %s144 = smul.addr %s143, 64
          %s145 = scalar_lea.vmem [#allocation2], %s144
          %s147 = ssub.s32 1024, 1024
          %148 = vsyncadd %s142, %s147
          %s149 = smul.addr %s15, 8
          %s150 = smul.addr %s149, 128
          %s151 = scalar_lea.hbm %s0, %s150
          %s152 = sshll.u32 %s145, 4
          %s153 = int_to_ptr.vmem [resolvable:$true] %s152
          %158 = dma.hbm_to_vmem [thread:$0]  %s151, 1024, %s153, %s142, 256, 256, 16
        $region20: #{tpu_custom_call.1} parent=15 // pred_fallthru
          _
        // Predicated region
        $region21: #{tpu_custom_call.1} parent=15 // pred_check
          %p159 = pneg %p61
        $region22: #{tpu_custom_call.1} parent=15 // pred_check_branch
          %161 = sbr.rel (%p159) target = $region24
        $region23: #{tpu_custom_call.1} parent=15 // pred_region
          %s162 = sand.u32 %s51, 1
          %s163 = scalar_lea.sflag [#allocation5], %s162
          %s164 = sand.u32 %s51, 1
          %s165 = smul.addr %s164, 64
          %s166 = scalar_lea.vmem [#allocation4], %s165
          %s168 = ssub.s32 1024, 1024
          %169 = vsyncadd %s163, %s168
          %s170 = smul.addr %s15, 8
          %s171 = smul.addr %s170, 128
          %s172 = scalar_lea.hbm %s1, %s171
          %s173 = sshll.u32 %s166, 4
          %s174 = int_to_ptr.vmem [resolvable:$true] %s173
          %179 = dma.hbm_to_vmem [thread:$0]  %s172, 1024, %s174, %s163, 256, 256, 16
        $region24: #{tpu_custom_call.1} parent=15 // pred_fallthru
          _
        // Predicated region
        $region25: #{tpu_custom_call.1} parent=15 // pred_check
          %p180 = pneg %p87
        $region26: #{tpu_custom_call.1} parent=15 // pred_check_branch
          %182 = sbr.rel (%p180) target = $region28
        $region27: #{tpu_custom_call.1} parent=15 // pred_region
          %p183 = scmp.lt.s32.totalorder %s15, 1
          %s184 = scalar_select %p183, %s15, 1
          %s185 = smul.addr %s184, 4
          %s186 = smul.addr %s185, 8
          %s187 = scalar_lea.vmem %s2, %s186
        $region28: #{tpu_custom_call.1} parent=15 // pred_fallthru
          _
      $region16: #{tpu_custom_call.1} parent=5 // pred_fallthru
        _
      %p188 = scmp.le.s32.totalorder 1, %s15
      %p189 = scmp.lt.s32.totalorder %s15, 3
      %p190 = pnand %p188, %p189
      %p191 = pneg %p190
      // Predicated region
      $region29: #{tpu_custom_call.1} parent=5 // pred_check
        _
      $region30: #{tpu_custom_call.1} parent=5 // pred_check_branch
        %193 = sbr.rel (%p190) target = $region32
      $region31: #{tpu_custom_call.1} parent=5 // pred_region
        %s194 = ssub.s32 %s15, 1
        %s195 = sand.u32 %s28, 1
        %s196 = scalar_lea.sflag [#allocation3], %s195
        %s197 = sand.u32 %s28, 1
        %s198 = smul.addr %s197, 64
        %s199 = scalar_lea.vmem [#allocation2], %s198
        // Predicated region
        $region33: #{tpu_custom_call.1} parent=31 // pred_check
          %p200 = pneg %p41
        $region34: #{tpu_custom_call.1} parent=31 // pred_check_branch
          %202 = sbr.rel (%p200) target = $region36
        $region35: #{tpu_custom_call.1} parent=31 // pred_region
          %203 = dma.done %s196, 1024
        $region36: #{tpu_custom_call.1} parent=31 // pred_fallthru
          _
        %s204 = sand.u32 %s54, 1
        %s205 = scalar_lea.sflag [#allocation5], %s204
        %s206 = sand.u32 %s54, 1
        %s207 = smul.addr %s206, 64
        %s208 = scalar_lea.vmem [#allocation4], %s207
        // Predicated region
        $region37: #{tpu_custom_call.1} parent=31 // pred_check
          %p209 = pneg %p67
        $region38: #{tpu_custom_call.1} parent=31 // pred_check_branch
          %211 = sbr.rel (%p209) target = $region40
        $region39: #{tpu_custom_call.1} parent=31 // pred_region
          %212 = dma.done %s205, 1024
        $region40: #{tpu_custom_call.1} parent=31 // pred_fallthru
          _
        %s213 = sand.u32 %s28, 1
        %s214 = scalar_lea.sflag [#allocation3], %s213
        %s215 = sand.u32 %s28, 1
        %s216 = smul.addr %s215, 64
        %s217 = scalar_lea.vmem [#allocation2], %s216
        %p218 = pneg %p41
        %p219 = pneg %p38
        %s220 = sand.u32 %s54, 1
        %s221 = scalar_lea.sflag [#allocation5], %s220
        %s222 = sand.u32 %s54, 1
        %s223 = smul.addr %s222, 64
        %s224 = scalar_lea.vmem [#allocation4], %s223
        %p225 = pneg %p67
        %p226 = pneg %p64
        %p227 = scmp.lt.s32.totalorder %s20, 1
        %s228 = scalar_select %p227, %s20, 1
        %s229 = smul.addr %s228, 4
        %s230 = smul.addr %s229, 8
        %s231 = scalar_lea.vmem %s2, %s230
        %p232 = pneg %p93
        %p233 = pneg %p90
        %p234 = pneg %p119
        %p235 = pneg %p116
        %p236 = scmp.lt.s32.totalorder %s20, 1
        %s237 = scalar_select %p236, %s20, 1
        %s238 = smul.addr %s237, 4
        %s239 = smul.addr %s238, 8
        %s240 = scalar_lea.vmem %s3, %s239
        %p241 = scmp.lt.s32.totalorder %s20, 1
        %s242 = scalar_select %p241, %s20, 1
        %s243 = smul.addr %s242, 4
        %s244 = smul.addr %s243, 8
        %s245 = scalar_lea.vmem %s2, %s244
        %p246 = scmp.lt.s32.totalorder %s20, 1
        %s247 = scalar_select %p246, %s20, 1
        %s248 = smul.addr %s247, 4
        %s249 = smul.addr %s248, 8
        %s250 = scalar_lea.vmem %s3, %s249
        %v251 = vld [vmem:[%s199] sm:$0xff]
        %v252 = vld [vmem:[%s199 + $0x8] sm:$0xff]
        %v253 = vld [vmem:[%s199 + $0x10] sm:$0xff]
        %v254 = vld [vmem:[%s199 + $0x18] sm:$0xff]
        %v255 = vld [vmem:[%s199 + $0x20] sm:$0xff]
        %v256 = vld [vmem:[%s199 + $0x28] sm:$0xff]
        %v257 = vld [vmem:[%s199 + $0x30] sm:$0xff]
        %v258 = vld [vmem:[%s199 + $0x38] sm:$0xff]
        %v259 = vld [vmem:[%s208] sm:$0xff]
        %v260 = vld [vmem:[%s208 + $0x8] sm:$0xff]
        %v261 = vld [vmem:[%s208 + $0x10] sm:$0xff]
        %v262 = vld [vmem:[%s208 + $0x18] sm:$0xff]
        %v263 = vld [vmem:[%s208 + $0x20] sm:$0xff]
        %v264 = vld [vmem:[%s208 + $0x28] sm:$0xff]
        %v265 = vld [vmem:[%s208 + $0x30] sm:$0xff]
        %v266 = vld [vmem:[%s208 + $0x38] sm:$0xff]
        %v267 = vld [vmem:[%s245] sm:$0xff]
        %v268 = vld [vmem:[%s245 + $0x8] sm:$0xff]
        %v269 = vld [vmem:[%s245 + $0x10] sm:$0xff]
        %v270 = vld [vmem:[%s245 + $0x18] sm:$0xff]
        %272 = vset.pattern.permute.xlu0 0
        %273 = vperm.xlu0 %272, %v267
        %v274 = vpop.permute.xlu0 %273
        %277 = vset.pattern.permute.xlu0 0
        %278 = vperm.xlu0 %277, %v268
        %v279 = vpop.permute.xlu0 %278
        %282 = vset.pattern.permute.xlu0 0
        %283 = vperm.xlu0 %282, %v269
        %v284 = vpop.permute.xlu0 %283
        %287 = vset.pattern.permute.xlu0 0
        %288 = vperm.xlu0 %287, %v270
        %v289 = vpop.permute.xlu0 %288
        %v291 = vmul.f32 %v251, %v274
        %v292 = vmul.f32 %v252, %v274
        %v293 = vmul.f32 %v253, %v279
        %v294 = vmul.f32 %v254, %v279
        %v295 = vmul.f32 %v255, %v284
        %v296 = vmul.f32 %v256, %v284
        %v297 = vmul.f32 %v257, %v289
        %v298 = vmul.f32 %v258, %v289
        %v299 = vadd.f32 %v291, %v293
        %v300 = vadd.f32 %v299, %v295
        %v301 = vadd.f32 %v300, %v297
        %v302 = vrot.slane %v301, 4
        %v303 = vadd.f32 %v301, %v302
        %v304 = vrot.slane %v303, 2
        %v305 = vadd.f32 %v303, %v304
        %v306 = vrot.slane %v305, 1
        %v307 = vadd.f32 %v305, %v306
        %v308 = vadd.f32 %v292, %v294
        %v309 = vadd.f32 %v308, %v296
        %v310 = vadd.f32 %v309, %v298
        %v311 = vrot.slane %v310, 4
        %v312 = vadd.f32 %v310, %v311
        %v313 = vrot.slane %v312, 2
        %v314 = vadd.f32 %v312, %v313
        %v315 = vrot.slane %v314, 1
        %v316 = vadd.f32 %v314, %v315
        %v317 = vmul.f32 %v259, %v307
        %v318 = vmul.f32 %v260, %v316
        %v319 = vmul.f32 %v261, %v307
        %v320 = vmul.f32 %v262, %v316
        %v321 = vmul.f32 %v263, %v307
        %v322 = vmul.f32 %v264, %v316
        %v323 = vmul.f32 %v265, %v307
        %v324 = vmul.f32 %v266, %v316
        %v325 = vlaneseq
        %v326 = vand.u32 %v325, 127
        %v327 = vadd.s32 %v326, 128
        %v328 = vmax.f32 %v317, %v318
        %329 = vmax.xlane.f32.xlu0 %v328
        %v330 = vpop.xlane.xlu0 %329
        %v331 = vmax.f32 %v319, %v320
        %332 = vmax.xlane.f32.xlu0 %v331
        %v333 = vpop.xlane.xlu0 %332
        %v334 = vmax.f32 %v321, %v322
        %335 = vmax.xlane.f32.xlu0 %v334
        %v336 = vpop.xlane.xlu0 %335
        %v337 = vmax.f32 %v323, %v324
        %338 = vmax.xlane.f32.xlu0 %v337
        %v339 = vpop.xlane.xlu0 %338
        %vm340 = vcmp.eq.f32.partialorder %v317, %v330
        %vm341 = vcmp.eq.f32.partialorder %v318, %v330
        %vm342 = vcmp.eq.f32.partialorder %v319, %v333
        %vm343 = vcmp.eq.f32.partialorder %v320, %v333
        %vm344 = vcmp.eq.f32.partialorder %v321, %v336
        %vm345 = vcmp.eq.f32.partialorder %v322, %v336
        %vm346 = vcmp.eq.f32.partialorder %v323, %v339
        %vm347 = vcmp.eq.f32.partialorder %v324, %v339
        %v348 = vsel %vm340, %v326, 256
        %v349 = vsel %vm341, %v327, 256
        %v350 = vsel %vm342, %v326, 256
        %v351 = vsel %vm343, %v327, 256
        %v352 = vsel %vm344, %v326, 256
        %v353 = vsel %vm345, %v327, 256
        %v354 = vsel %vm346, %v326, 256
        %v355 = vsel %vm347, %v327, 256
        %vm356 = vcmp.lt.s32.totalorder %v348, %v349
        %v357 = vsel %vm356, %v348, %v349
        %v358 = vand.u32 %v357, 65535
        %v359 = vshra.s32 %v357, 16
        %v360 = vcvt.s32.f32 %v358
        %v361 = vcvt.s32.f32 %v359
        %362 = vmin.xlane.f32.xlu0 %v361
        %v363 = vpop.xlane.xlu0 %362
        %vm364 = vcmp.eq.f32.partialorder %v361, %v363
        %v365 = vsel %vm364, %v360, inf
        %366 = vmin.xlane.f32.xlu0 %v365
        %v367 = vpop.xlane.xlu0 %366
        %v368 = vcvt.f32.s32 %v367
        %v369 = vcvt.f32.s32 %v363
        %v370 = vshll.u32 %v369, 16
        %v371 = vadd.s32 %v370, %v368
        %vm372 = vcmp.lt.s32.totalorder %v350, %v351
        %v373 = vsel %vm372, %v350, %v351
        %v374 = vand.u32 %v373, 65535
        %v375 = vshra.s32 %v373, 16
        %v376 = vcvt.s32.f32 %v374
        %v377 = vcvt.s32.f32 %v375
        %378 = vmin.xlane.f32.xlu0 %v377
        %v379 = vpop.xlane.xlu0 %378
        %vm380 = vcmp.eq.f32.partialorder %v377, %v379
        %v381 = vsel %vm380, %v376, inf
        %382 = vmin.xlane.f32.xlu0 %v381
        %v383 = vpop.xlane.xlu0 %382
        %v384 = vcvt.f32.s32 %v383
        %v385 = vcvt.f32.s32 %v379
        %v386 = vshll.u32 %v385, 16
        %v387 = vadd.s32 %v386, %v384
        %vm388 = vcmp.lt.s32.totalorder %v352, %v353
        %v389 = vsel %vm388, %v352, %v353
        %v390 = vand.u32 %v389, 65535
        %v391 = vshra.s32 %v389, 16
        %v392 = vcvt.s32.f32 %v390
        %v393 = vcvt.s32.f32 %v391
        %394 = vmin.xlane.f32.xlu0 %v393
        %v395 = vpop.xlane.xlu0 %394
        %vm396 = vcmp.eq.f32.partialorder %v393, %v395
        %v397 = vsel %vm396, %v392, inf
        %398 = vmin.xlane.f32.xlu0 %v397
        %v399 = vpop.xlane.xlu0 %398
        %v400 = vcvt.f32.s32 %v399
        %v401 = vcvt.f32.s32 %v395
        %v402 = vshll.u32 %v401, 16
        %v403 = vadd.s32 %v402, %v400
        %vm404 = vcmp.lt.s32.totalorder %v354, %v355
        %v405 = vsel %vm404, %v354, %v355
        %v406 = vand.u32 %v405, 65535
        %v407 = vshra.s32 %v405, 16
        %v408 = vcvt.s32.f32 %v406
        %v409 = vcvt.s32.f32 %v407
        %410 = vmin.xlane.f32.xlu0 %v409
        %v411 = vpop.xlane.xlu0 %410
        %vm412 = vcmp.eq.f32.partialorder %v409, %v411
        %v413 = vsel %vm412, %v408, inf
        %414 = vmin.xlane.f32.xlu0 %v413
        %v415 = vpop.xlane.xlu0 %414
        %v416 = vcvt.f32.s32 %v415
        %v417 = vcvt.f32.s32 %v411
        %v418 = vshll.u32 %v417, 16
        %v419 = vadd.s32 %v418, %v416
        %vm420 = vcmp.eq.s32.totalorder %v326, %v371
        %vm421 = vcmp.eq.s32.totalorder %v327, %v371
        %vm422 = vcmp.eq.s32.totalorder %v326, %v387
        %vm423 = vcmp.eq.s32.totalorder %v327, %v387
        %vm424 = vcmp.eq.s32.totalorder %v326, %v403
        %vm425 = vcmp.eq.s32.totalorder %v327, %v403
        %vm426 = vcmp.eq.s32.totalorder %v326, %v419
        %vm427 = vcmp.eq.s32.totalorder %v327, %v419
        %v428 = vsel %vm420, -inf, %v317
        %v429 = vsel %vm421, -inf, %v318
        %v430 = vsel %vm422, -inf, %v319
        %v431 = vsel %vm423, -inf, %v320
        %v432 = vsel %vm424, -inf, %v321
        %v433 = vsel %vm425, -inf, %v322
        %v434 = vsel %vm426, -inf, %v323
        %v435 = vsel %vm427, -inf, %v324
        %v436 = vmax.f32 %v428, %v429
        %437 = vmax.xlane.f32.xlu0 %v436
        %v438 = vpop.xlane.xlu0 %437
        %v439 = vmax.f32 %v430, %v431
        %440 = vmax.xlane.f32.xlu0 %v439
        %v441 = vpop.xlane.xlu0 %440
        %v442 = vmax.f32 %v432, %v433
        %443 = vmax.xlane.f32.xlu0 %v442
        %v444 = vpop.xlane.xlu0 %443
        %v445 = vmax.f32 %v434, %v435
        %446 = vmax.xlane.f32.xlu0 %v445
        %v447 = vpop.xlane.xlu0 %446
        %vm448 = vcmp.eq.f32.partialorder %v317, %v438
        %vm449 = vcmp.eq.f32.partialorder %v318, %v438
        %vm450 = vcmp.eq.f32.partialorder %v319, %v441
        %vm451 = vcmp.eq.f32.partialorder %v320, %v441
        %vm452 = vcmp.eq.f32.partialorder %v321, %v444
        %vm453 = vcmp.eq.f32.partialorder %v322, %v444
        %vm454 = vcmp.eq.f32.partialorder %v323, %v447
        %vm455 = vcmp.eq.f32.partialorder %v324, %v447
        %vm456 = vmxor %vm420, 1
        %vm457 = vmxor %vm421, 1
        %vm458 = vmxor %vm422, 1
        %vm459 = vmxor %vm423, 1
        %vm460 = vmxor %vm424, 1
        %vm461 = vmxor %vm425, 1
        %vm462 = vmxor %vm426, 1
        %vm463 = vmxor %vm427, 1
        %vm464 = vmand %vm448, %vm456
        %vm465 = vmand %vm449, %vm457
        %vm466 = vmand %vm450, %vm458
        %vm467 = vmand %vm451, %vm459
        %vm468 = vmand %vm452, %vm460
        %vm469 = vmand %vm453, %vm461
        %vm470 = vmand %vm454, %vm462
        %vm471 = vmand %vm455, %vm463
        %v472 = vsel %vm464, %v326, 256
        %v473 = vsel %vm465, %v327, 256
        %v474 = vsel %vm466, %v326, 256
        %v475 = vsel %vm467, %v327, 256
        %v476 = vsel %vm468, %v326, 256
        %v477 = vsel %vm469, %v327, 256
        %v478 = vsel %vm470, %v326, 256
        %v479 = vsel %vm471, %v327, 256
        %vm480 = vcmp.lt.s32.totalorder %v472, %v473
        %v481 = vsel %vm480, %v472, %v473
        %v482 = vand.u32 %v481, 65535
        %v483 = vshra.s32 %v481, 16
        %v484 = vcvt.s32.f32 %v482
        %v485 = vcvt.s32.f32 %v483
        %486 = vmin.xlane.f32.xlu0 %v485
        %v487 = vpop.xlane.xlu0 %486
        %vm488 = vcmp.eq.f32.partialorder %v485, %v487
        %v489 = vsel %vm488, %v484, inf
        %490 = vmin.xlane.f32.xlu0 %v489
        %v491 = vpop.xlane.xlu0 %490
        %v492 = vcvt.f32.s32 %v491
        %v493 = vcvt.f32.s32 %v487
        %v494 = vshll.u32 %v493, 16
        %v495 = vadd.s32 %v494, %v492
        %vm496 = vcmp.lt.s32.totalorder %v474, %v475
        %v497 = vsel %vm496, %v474, %v475
        %v498 = vand.u32 %v497, 65535
        %v499 = vshra.s32 %v497, 16
        %v500 = vcvt.s32.f32 %v498
        %v501 = vcvt.s32.f32 %v499
        %502 = vmin.xlane.f32.xlu0 %v501
        %v503 = vpop.xlane.xlu0 %502
        %vm504 = vcmp.eq.f32.partialorder %v501, %v503
        %v505 = vsel %vm504, %v500, inf
        %506 = vmin.xlane.f32.xlu0 %v505
        %v507 = vpop.xlane.xlu0 %506
        %v508 = vcvt.f32.s32 %v507
        %v509 = vcvt.f32.s32 %v503
        %v510 = vshll.u32 %v509, 16
        %v511 = vadd.s32 %v510, %v508
        %vm512 = vcmp.lt.s32.totalorder %v476, %v477
        %v513 = vsel %vm512, %v476, %v477
        %v514 = vand.u32 %v513, 65535
        %v515 = vshra.s32 %v513, 16
        %v516 = vcvt.s32.f32 %v514
        %v517 = vcvt.s32.f32 %v515
        %518 = vmin.xlane.f32.xlu0 %v517
        %v519 = vpop.xlane.xlu0 %518
        %vm520 = vcmp.eq.f32.partialorder %v517, %v519
        %v521 = vsel %vm520, %v516, inf
        %522 = vmin.xlane.f32.xlu0 %v521
        %v523 = vpop.xlane.xlu0 %522
        %v524 = vcvt.f32.s32 %v523
        %v525 = vcvt.f32.s32 %v519
        %v526 = vshll.u32 %v525, 16
        %v527 = vadd.s32 %v526, %v524
        %vm528 = vcmp.lt.s32.totalorder %v478, %v479
        %v529 = vsel %vm528, %v478, %v479
        %v530 = vand.u32 %v529, 65535
        %v531 = vshra.s32 %v529, 16
        %v532 = vcvt.s32.f32 %v530
        %v533 = vcvt.s32.f32 %v531
        %534 = vmin.xlane.f32.xlu0 %v533
        %v535 = vpop.xlane.xlu0 %534
        %vm536 = vcmp.eq.f32.partialorder %v533, %v535
        %v537 = vsel %vm536, %v532, inf
        %538 = vmin.xlane.f32.xlu0 %v537
        %v539 = vpop.xlane.xlu0 %538
        %v540 = vcvt.f32.s32 %v539
        %v541 = vcvt.f32.s32 %v535
        %v542 = vshll.u32 %v541, 16
        %v543 = vadd.s32 %v542, %v540
        %vm544 = vcmp.eq.s32.totalorder %v326, %v495
        %vm545 = vcmp.eq.s32.totalorder %v327, %v495
        %vm546 = vcmp.eq.s32.totalorder %v326, %v511
        %vm547 = vcmp.eq.s32.totalorder %v327, %v511
        %vm548 = vcmp.eq.s32.totalorder %v326, %v527
        %vm549 = vcmp.eq.s32.totalorder %v327, %v527
        %vm550 = vcmp.eq.s32.totalorder %v326, %v543
        %vm551 = vcmp.eq.s32.totalorder %v327, %v543
        %vm552 = vmor %vm420, %vm544
        %vm553 = vmor %vm421, %vm545
        %vm554 = vmor %vm422, %vm546
        %vm555 = vmor %vm423, %vm547
        %vm556 = vmor %vm424, %vm548
        %vm557 = vmor %vm425, %vm549
        %vm558 = vmor %vm426, %vm550
        %vm559 = vmor %vm427, %vm551
        %v560 = vsel %vm552, -inf, %v317
        %v561 = vsel %vm553, -inf, %v318
        %v562 = vsel %vm554, -inf, %v319
        %v563 = vsel %vm555, -inf, %v320
        %v564 = vsel %vm556, -inf, %v321
        %v565 = vsel %vm557, -inf, %v322
        %v566 = vsel %vm558, -inf, %v323
        %v567 = vsel %vm559, -inf, %v324
        %v568 = vmax.f32 %v560, %v561
        %569 = vmax.xlane.f32.xlu0 %v568
        %v570 = vpop.xlane.xlu0 %569
        %v571 = vmax.f32 %v562, %v563
        %572 = vmax.xlane.f32.xlu0 %v571
        %v573 = vpop.xlane.xlu0 %572
        %v574 = vmax.f32 %v564, %v565
        %575 = vmax.xlane.f32.xlu0 %v574
        %v576 = vpop.xlane.xlu0 %575
        %v577 = vmax.f32 %v566, %v567
        %578 = vmax.xlane.f32.xlu0 %v577
        %v579 = vpop.xlane.xlu0 %578
        %vm580 = vcmp.eq.f32.partialorder %v317, %v570
        %vm581 = vcmp.eq.f32.partialorder %v318, %v570
        %vm582 = vcmp.eq.f32.partialorder %v319, %v573
        %vm583 = vcmp.eq.f32.partialorder %v320, %v573
        %vm584 = vcmp.eq.f32.partialorder %v321, %v576
        %vm585 = vcmp.eq.f32.partialorder %v322, %v576
        %vm586 = vcmp.eq.f32.partialorder %v323, %v579
        %vm587 = vcmp.eq.f32.partialorder %v324, %v579
        %vm588 = vmxor %vm552, 1
        %vm589 = vmxor %vm553, 1
        %vm590 = vmxor %vm554, 1
        %vm591 = vmxor %vm555, 1
        %vm592 = vmxor %vm556, 1
        %vm593 = vmxor %vm557, 1
        %vm594 = vmxor %vm558, 1
        %vm595 = vmxor %vm559, 1
        %vm596 = vmand %vm580, %vm588
        %vm597 = vmand %vm581, %vm589
        %vm598 = vmand %vm582, %vm590
        %vm599 = vmand %vm583, %vm591
        %vm600 = vmand %vm584, %vm592
        %vm601 = vmand %vm585, %vm593
        %vm602 = vmand %vm586, %vm594
        %vm603 = vmand %vm587, %vm595
        %v604 = vsel %vm596, %v326, 256
        %v605 = vsel %vm597, %v327, 256
        %v606 = vsel %vm598, %v326, 256
        %v607 = vsel %vm599, %v327, 256
        %v608 = vsel %vm600, %v326, 256
        %v609 = vsel %vm601, %v327, 256
        %v610 = vsel %vm602, %v326, 256
        %v611 = vsel %vm603, %v327, 256
        %vm612 = vcmp.lt.s32.totalorder %v604, %v605
        %v613 = vsel %vm612, %v604, %v605
        %v614 = vand.u32 %v613, 65535
        %v615 = vshra.s32 %v613, 16
        %v616 = vcvt.s32.f32 %v614
        %v617 = vcvt.s32.f32 %v615
        %618 = vmin.xlane.f32.xlu0 %v617
        %v619 = vpop.xlane.xlu0 %618
        %vm620 = vcmp.eq.f32.partialorder %v617, %v619
        %v621 = vsel %vm620, %v616, inf
        %622 = vmin.xlane.f32.xlu0 %v621
        %v623 = vpop.xlane.xlu0 %622
        %v624 = vcvt.f32.s32 %v623
        %v625 = vcvt.f32.s32 %v619
        %v626 = vshll.u32 %v625, 16
        %v627 = vadd.s32 %v626, %v624
        %vm628 = vcmp.lt.s32.totalorder %v606, %v607
        %v629 = vsel %vm628, %v606, %v607
        %v630 = vand.u32 %v629, 65535
        %v631 = vshra.s32 %v629, 16
        %v632 = vcvt.s32.f32 %v630
        %v633 = vcvt.s32.f32 %v631
        %634 = vmin.xlane.f32.xlu0 %v633
        %v635 = vpop.xlane.xlu0 %634
        %vm636 = vcmp.eq.f32.partialorder %v633, %v635
        %v637 = vsel %vm636, %v632, inf
        %638 = vmin.xlane.f32.xlu0 %v637
        %v639 = vpop.xlane.xlu0 %638
        %v640 = vcvt.f32.s32 %v639
        %v641 = vcvt.f32.s32 %v635
        %v642 = vshll.u32 %v641, 16
        %v643 = vadd.s32 %v642, %v640
        %vm644 = vcmp.lt.s32.totalorder %v608, %v609
        %v645 = vsel %vm644, %v608, %v609
        %v646 = vand.u32 %v645, 65535
        %v647 = vshra.s32 %v645, 16
        %v648 = vcvt.s32.f32 %v646
        %v649 = vcvt.s32.f32 %v647
        %650 = vmin.xlane.f32.xlu0 %v649
        %v651 = vpop.xlane.xlu0 %650
        %vm652 = vcmp.eq.f32.partialorder %v649, %v651
        %v653 = vsel %vm652, %v648, inf
        %654 = vmin.xlane.f32.xlu0 %v653
        %v655 = vpop.xlane.xlu0 %654
        %v656 = vcvt.f32.s32 %v655
        %v657 = vcvt.f32.s32 %v651
        %v658 = vshll.u32 %v657, 16
        %v659 = vadd.s32 %v658, %v656
        %vm660 = vcmp.lt.s32.totalorder %v610, %v611
        %v661 = vsel %vm660, %v610, %v611
        %v662 = vand.u32 %v661, 65535
        %v663 = vshra.s32 %v661, 16
        %v664 = vcvt.s32.f32 %v662
        %v665 = vcvt.s32.f32 %v663
        %666 = vmin.xlane.f32.xlu0 %v665
        %v667 = vpop.xlane.xlu0 %666
        %vm668 = vcmp.eq.f32.partialorder %v665, %v667
        %v669 = vsel %vm668, %v664, inf
        %670 = vmin.xlane.f32.xlu0 %v669
        %v671 = vpop.xlane.xlu0 %670
        %v672 = vcvt.f32.s32 %v671
        %v673 = vcvt.f32.s32 %v667
        %v674 = vshll.u32 %v673, 16
        %v675 = vadd.s32 %v674, %v672
        %vm676 = vcmp.eq.s32.totalorder %v326, %v627
        %vm677 = vcmp.eq.s32.totalorder %v327, %v627
        %vm678 = vcmp.eq.s32.totalorder %v326, %v643
        %vm679 = vcmp.eq.s32.totalorder %v327, %v643
        %vm680 = vcmp.eq.s32.totalorder %v326, %v659
        %vm681 = vcmp.eq.s32.totalorder %v327, %v659
        %vm682 = vcmp.eq.s32.totalorder %v326, %v675
        %vm683 = vcmp.eq.s32.totalorder %v327, %v675
        %vm684 = vmor %vm552, %vm676
        %vm685 = vmor %vm553, %vm677
        %vm686 = vmor %vm554, %vm678
        %vm687 = vmor %vm555, %vm679
        %vm688 = vmor %vm556, %vm680
        %vm689 = vmor %vm557, %vm681
        %vm690 = vmor %vm558, %vm682
        %vm691 = vmor %vm559, %vm683
        %v692 = vsel %vm684, -inf, %v317
        %v693 = vsel %vm685, -inf, %v318
        %v694 = vsel %vm686, -inf, %v319
        %v695 = vsel %vm687, -inf, %v320
        %v696 = vsel %vm688, -inf, %v321
        %v697 = vsel %vm689, -inf, %v322
        %v698 = vsel %vm690, -inf, %v323
        %v699 = vsel %vm691, -inf, %v324
        %v700 = vmax.f32 %v692, %v693
        %701 = vmax.xlane.f32.xlu0 %v700
        %v702 = vpop.xlane.xlu0 %701
        %v703 = vmax.f32 %v694, %v695
        %704 = vmax.xlane.f32.xlu0 %v703
        %v705 = vpop.xlane.xlu0 %704
        %v706 = vmax.f32 %v696, %v697
        %707 = vmax.xlane.f32.xlu0 %v706
        %v708 = vpop.xlane.xlu0 %707
        %v709 = vmax.f32 %v698, %v699
        %710 = vmax.xlane.f32.xlu0 %v709
        %v711 = vpop.xlane.xlu0 %710
        %vm712 = vcmp.eq.f32.partialorder %v317, %v702
        %vm713 = vcmp.eq.f32.partialorder %v318, %v702
        %vm714 = vcmp.eq.f32.partialorder %v319, %v705
        %vm715 = vcmp.eq.f32.partialorder %v320, %v705
        %vm716 = vcmp.eq.f32.partialorder %v321, %v708
        %vm717 = vcmp.eq.f32.partialorder %v322, %v708
        %vm718 = vcmp.eq.f32.partialorder %v323, %v711
        %vm719 = vcmp.eq.f32.partialorder %v324, %v711
        %vm720 = vmxor %vm684, 1
        %vm721 = vmxor %vm685, 1
        %vm722 = vmxor %vm686, 1
        %vm723 = vmxor %vm687, 1
        %vm724 = vmxor %vm688, 1
        %vm725 = vmxor %vm689, 1
        %vm726 = vmxor %vm690, 1
        %vm727 = vmxor %vm691, 1
        %vm728 = vmand %vm712, %vm720
        %vm729 = vmand %vm713, %vm721
        %vm730 = vmand %vm714, %vm722
        %vm731 = vmand %vm715, %vm723
        %vm732 = vmand %vm716, %vm724
        %vm733 = vmand %vm717, %vm725
        %vm734 = vmand %vm718, %vm726
        %vm735 = vmand %vm719, %vm727
        %v736 = vsel %vm728, %v326, 256
        %v737 = vsel %vm729, %v327, 256
        %v738 = vsel %vm730, %v326, 256
        %v739 = vsel %vm731, %v327, 256
        %v740 = vsel %vm732, %v326, 256
        %v741 = vsel %vm733, %v327, 256
        %v742 = vsel %vm734, %v326, 256
        %v743 = vsel %vm735, %v327, 256
        %vm744 = vcmp.lt.s32.totalorder %v736, %v737
        %v745 = vsel %vm744, %v736, %v737
        %v746 = vand.u32 %v745, 65535
        %v747 = vshra.s32 %v745, 16
        %v748 = vcvt.s32.f32 %v746
        %v749 = vcvt.s32.f32 %v747
        %750 = vmin.xlane.f32.xlu0 %v749
        %v751 = vpop.xlane.xlu0 %750
        %vm752 = vcmp.eq.f32.partialorder %v749, %v751
        %v753 = vsel %vm752, %v748, inf
        %754 = vmin.xlane.f32.xlu0 %v753
        %v755 = vpop.xlane.xlu0 %754
        %v756 = vcvt.f32.s32 %v755
        %v757 = vcvt.f32.s32 %v751
        %v758 = vshll.u32 %v757, 16
        %v759 = vadd.s32 %v758, %v756
        %vm760 = vcmp.lt.s32.totalorder %v738, %v739
        %v761 = vsel %vm760, %v738, %v739
        %v762 = vand.u32 %v761, 65535
        %v763 = vshra.s32 %v761, 16
        %v764 = vcvt.s32.f32 %v762
        %v765 = vcvt.s32.f32 %v763
        %766 = vmin.xlane.f32.xlu0 %v765
        %v767 = vpop.xlane.xlu0 %766
        %vm768 = vcmp.eq.f32.partialorder %v765, %v767
        %v769 = vsel %vm768, %v764, inf
        %770 = vmin.xlane.f32.xlu0 %v769
        %v771 = vpop.xlane.xlu0 %770
        %v772 = vcvt.f32.s32 %v771
        %v773 = vcvt.f32.s32 %v767
        %v774 = vshll.u32 %v773, 16
        %v775 = vadd.s32 %v774, %v772
        %vm776 = vcmp.lt.s32.totalorder %v740, %v741
        %v777 = vsel %vm776, %v740, %v741
        %v778 = vand.u32 %v777, 65535
        %v779 = vshra.s32 %v777, 16
        %v780 = vcvt.s32.f32 %v778
        %v781 = vcvt.s32.f32 %v779
        %782 = vmin.xlane.f32.xlu0 %v781
        %v783 = vpop.xlane.xlu0 %782
        %vm784 = vcmp.eq.f32.partialorder %v781, %v783
        %v785 = vsel %vm784, %v780, inf
        %786 = vmin.xlane.f32.xlu0 %v785
        %v787 = vpop.xlane.xlu0 %786
        %v788 = vcvt.f32.s32 %v787
        %v789 = vcvt.f32.s32 %v783
        %v790 = vshll.u32 %v789, 16
        %v791 = vadd.s32 %v790, %v788
        %vm792 = vcmp.lt.s32.totalorder %v742, %v743
        %v793 = vsel %vm792, %v742, %v743
        %v794 = vand.u32 %v793, 65535
        %v795 = vshra.s32 %v793, 16
        %v796 = vcvt.s32.f32 %v794
        %v797 = vcvt.s32.f32 %v795
        %798 = vmin.xlane.f32.xlu0 %v797
        %v799 = vpop.xlane.xlu0 %798
        %vm800 = vcmp.eq.f32.partialorder %v797, %v799
        %v801 = vsel %vm800, %v796, inf
        %802 = vmin.xlane.f32.xlu0 %v801
        %v803 = vpop.xlane.xlu0 %802
        %v804 = vcvt.f32.s32 %v803
        %v805 = vcvt.f32.s32 %v799
        %v806 = vshll.u32 %v805, 16
        %v807 = vadd.s32 %v806, %v804
        %vm808 = vcmp.eq.s32.totalorder %v326, %v759
        %vm809 = vcmp.eq.s32.totalorder %v327, %v759
        %vm810 = vcmp.eq.s32.totalorder %v326, %v775
        %vm811 = vcmp.eq.s32.totalorder %v327, %v775
        %vm812 = vcmp.eq.s32.totalorder %v326, %v791
        %vm813 = vcmp.eq.s32.totalorder %v327, %v791
        %vm814 = vcmp.eq.s32.totalorder %v326, %v807
        %vm815 = vcmp.eq.s32.totalorder %v327, %v807
        %vm816 = vmor %vm684, %vm808
        %vm817 = vmor %vm685, %vm809
        %vm818 = vmor %vm686, %vm810
        %vm819 = vmor %vm687, %vm811
        %vm820 = vmor %vm688, %vm812
        %vm821 = vmor %vm689, %vm813
        %vm822 = vmor %vm690, %vm814
        %vm823 = vmor %vm691, %vm815
        %v824 = vsel %vm816, -inf, %v317
        %v825 = vsel %vm817, -inf, %v318
        %v826 = vsel %vm818, -inf, %v319
        %v827 = vsel %vm819, -inf, %v320
        %v828 = vsel %vm820, -inf, %v321
        %v829 = vsel %vm821, -inf, %v322
        %v830 = vsel %vm822, -inf, %v323
        %v831 = vsel %vm823, -inf, %v324
        %v832 = vmax.f32 %v824, %v825
        %833 = vmax.xlane.f32.xlu0 %v832
        %v834 = vpop.xlane.xlu0 %833
        %v835 = vmax.f32 %v826, %v827
        %836 = vmax.xlane.f32.xlu0 %v835
        %v837 = vpop.xlane.xlu0 %836
        %v838 = vmax.f32 %v828, %v829
        %839 = vmax.xlane.f32.xlu0 %v838
        %v840 = vpop.xlane.xlu0 %839
        %v841 = vmax.f32 %v830, %v831
        %842 = vmax.xlane.f32.xlu0 %v841
        %v843 = vpop.xlane.xlu0 %842
        %vm844 = vcmp.eq.f32.partialorder %v317, %v834
        %vm845 = vcmp.eq.f32.partialorder %v318, %v834
        %vm846 = vcmp.eq.f32.partialorder %v319, %v837
        %vm847 = vcmp.eq.f32.partialorder %v320, %v837
        %vm848 = vcmp.eq.f32.partialorder %v321, %v840
        %vm849 = vcmp.eq.f32.partialorder %v322, %v840
        %vm850 = vcmp.eq.f32.partialorder %v323, %v843
        %vm851 = vcmp.eq.f32.partialorder %v324, %v843
        %vm852 = vmxor %vm816, 1
        %vm853 = vmxor %vm817, 1
        %vm854 = vmxor %vm818, 1
        %vm855 = vmxor %vm819, 1
        %vm856 = vmxor %vm820, 1
        %vm857 = vmxor %vm821, 1
        %vm858 = vmxor %vm822, 1
        %vm859 = vmxor %vm823, 1
        %vm860 = vmand %vm844, %vm852
        %vm861 = vmand %vm845, %vm853
        %vm862 = vmand %vm846, %vm854
        %vm863 = vmand %vm847, %vm855
        %vm864 = vmand %vm848, %vm856
        %vm865 = vmand %vm849, %vm857
        %vm866 = vmand %vm850, %vm858
        %vm867 = vmand %vm851, %vm859
        %v868 = vsel %vm860, %v326, 256
        %v869 = vsel %vm861, %v327, 256
        %v870 = vsel %vm862, %v326, 256
        %v871 = vsel %vm863, %v327, 256
        %v872 = vsel %vm864, %v326, 256
        %v873 = vsel %vm865, %v327, 256
        %v874 = vsel %vm866, %v326, 256
        %v875 = vsel %vm867, %v327, 256
        %vm876 = vcmp.lt.s32.totalorder %v868, %v869
        %v877 = vsel %vm876, %v868, %v869
        %v878 = vand.u32 %v877, 65535
        %v879 = vshra.s32 %v877, 16
        %v880 = vcvt.s32.f32 %v878
        %v881 = vcvt.s32.f32 %v879
        %882 = vmin.xlane.f32.xlu0 %v881
        %v883 = vpop.xlane.xlu0 %882
        %vm884 = vcmp.eq.f32.partialorder %v881, %v883
        %v885 = vsel %vm884, %v880, inf
        %886 = vmin.xlane.f32.xlu0 %v885
        %v887 = vpop.xlane.xlu0 %886
        %v888 = vcvt.f32.s32 %v887
        %v889 = vcvt.f32.s32 %v883
        %v890 = vshll.u32 %v889, 16
        %v891 = vadd.s32 %v890, %v888
        %vm892 = vcmp.lt.s32.totalorder %v870, %v871
        %v893 = vsel %vm892, %v870, %v871
        %v894 = vand.u32 %v893, 65535
        %v895 = vshra.s32 %v893, 16
        %v896 = vcvt.s32.f32 %v894
        %v897 = vcvt.s32.f32 %v895
        %898 = vmin.xlane.f32.xlu0 %v897
        %v899 = vpop.xlane.xlu0 %898
        %vm900 = vcmp.eq.f32.partialorder %v897, %v899
        %v901 = vsel %vm900, %v896, inf
        %902 = vmin.xlane.f32.xlu0 %v901
        %v903 = vpop.xlane.xlu0 %902
        %v904 = vcvt.f32.s32 %v903
        %v905 = vcvt.f32.s32 %v899
        %v906 = vshll.u32 %v905, 16
        %v907 = vadd.s32 %v906, %v904
        %vm908 = vcmp.lt.s32.totalorder %v872, %v873
        %v909 = vsel %vm908, %v872, %v873
        %v910 = vand.u32 %v909, 65535
        %v911 = vshra.s32 %v909, 16
        %v912 = vcvt.s32.f32 %v910
        %v913 = vcvt.s32.f32 %v911
        %914 = vmin.xlane.f32.xlu0 %v913
        %v915 = vpop.xlane.xlu0 %914
        %vm916 = vcmp.eq.f32.partialorder %v913, %v915
        %v917 = vsel %vm916, %v912, inf
        %918 = vmin.xlane.f32.xlu0 %v917
        %v919 = vpop.xlane.xlu0 %918
        %v920 = vcvt.f32.s32 %v919
        %v921 = vcvt.f32.s32 %v915
        %v922 = vshll.u32 %v921, 16
        %v923 = vadd.s32 %v922, %v920
        %vm924 = vcmp.lt.s32.totalorder %v874, %v875
        %v925 = vsel %vm924, %v874, %v875
        %v926 = vand.u32 %v925, 65535
        %v927 = vshra.s32 %v925, 16
        %v928 = vcvt.s32.f32 %v926
        %v929 = vcvt.s32.f32 %v927
        %930 = vmin.xlane.f32.xlu0 %v929
        %v931 = vpop.xlane.xlu0 %930
        %vm932 = vcmp.eq.f32.partialorder %v929, %v931
        %v933 = vsel %vm932, %v928, inf
        %934 = vmin.xlane.f32.xlu0 %v933
        %v935 = vpop.xlane.xlu0 %934
        %v936 = vcvt.f32.s32 %v935
        %v937 = vcvt.f32.s32 %v931
        %v938 = vshll.u32 %v937, 16
        %v939 = vadd.s32 %v938, %v936
        %vm940 = vcmp.eq.s32.totalorder %v326, %v891
        %vm941 = vcmp.eq.s32.totalorder %v327, %v891
        %vm942 = vcmp.eq.s32.totalorder %v326, %v907
        %vm943 = vcmp.eq.s32.totalorder %v327, %v907
        %vm944 = vcmp.eq.s32.totalorder %v326, %v923
        %vm945 = vcmp.eq.s32.totalorder %v327, %v923
        %vm946 = vcmp.eq.s32.totalorder %v326, %v939
        %vm947 = vcmp.eq.s32.totalorder %v327, %v939
        %vm948 = vmor %vm816, %vm940
        %vm949 = vmor %vm817, %vm941
        %vm950 = vmor %vm818, %vm942
        %vm951 = vmor %vm819, %vm943
        %vm952 = vmor %vm820, %vm944
        %vm953 = vmor %vm821, %vm945
        %vm954 = vmor %vm822, %vm946
        %vm955 = vmor %vm823, %vm947
        %v956 = vsel %vm948, -inf, %v317
        %v957 = vsel %vm949, -inf, %v318
        %v958 = vsel %vm950, -inf, %v319
        %v959 = vsel %vm951, -inf, %v320
        %v960 = vsel %vm952, -inf, %v321
        %v961 = vsel %vm953, -inf, %v322
        %v962 = vsel %vm954, -inf, %v323
        %v963 = vsel %vm955, -inf, %v324
        %v964 = vmax.f32 %v956, %v957
        %965 = vmax.xlane.f32.xlu0 %v964
        %v966 = vpop.xlane.xlu0 %965
        %v967 = vmax.f32 %v958, %v959
        %968 = vmax.xlane.f32.xlu0 %v967
        %v969 = vpop.xlane.xlu0 %968
        %v970 = vmax.f32 %v960, %v961
        %971 = vmax.xlane.f32.xlu0 %v970
        %v972 = vpop.xlane.xlu0 %971
        %v973 = vmax.f32 %v962, %v963
        %974 = vmax.xlane.f32.xlu0 %v973
        %v975 = vpop.xlane.xlu0 %974
        %vm976 = vcmp.eq.f32.partialorder %v317, %v966
        %vm977 = vcmp.eq.f32.partialorder %v318, %v966
        %vm978 = vcmp.eq.f32.partialorder %v319, %v969
        %vm979 = vcmp.eq.f32.partialorder %v320, %v969
        %vm980 = vcmp.eq.f32.partialorder %v321, %v972
        %vm981 = vcmp.eq.f32.partialorder %v322, %v972
        %vm982 = vcmp.eq.f32.partialorder %v323, %v975
        %vm983 = vcmp.eq.f32.partialorder %v324, %v975
        %vm984 = vmxor %vm948, 1
        %vm985 = vmxor %vm949, 1
        %vm986 = vmxor %vm950, 1
        %vm987 = vmxor %vm951, 1
        %vm988 = vmxor %vm952, 1
        %vm989 = vmxor %vm953, 1
        %vm990 = vmxor %vm954, 1
        %vm991 = vmxor %vm955, 1
        %vm992 = vmand %vm976, %vm984
        %vm993 = vmand %vm977, %vm985
        %vm994 = vmand %vm978, %vm986
        %vm995 = vmand %vm979, %vm987
        %vm996 = vmand %vm980, %vm988
        %vm997 = vmand %vm981, %vm989
        %vm998 = vmand %vm982, %vm990
        %vm999 = vmand %vm983, %vm991
        %v1000 = vsel %vm992, %v326, 256
        %v1001 = vsel %vm993, %v327, 256
        %v1002 = vsel %vm994, %v326, 256
        %v1003 = vsel %vm995, %v327, 256
        %v1004 = vsel %vm996, %v326, 256
        %v1005 = vsel %vm997, %v327, 256
        %v1006 = vsel %vm998, %v326, 256
        %v1007 = vsel %vm999, %v327, 256
        %vm1008 = vcmp.lt.s32.totalorder %v1000, %v1001
        %v1009 = vsel %vm1008, %v1000, %v1001
        %v1010 = vand.u32 %v1009, 65535
        %v1011 = vshra.s32 %v1009, 16
        %v1012 = vcvt.s32.f32 %v1010
        %v1013 = vcvt.s32.f32 %v1011
        %1014 = vmin.xlane.f32.xlu0 %v1013
        %v1015 = vpop.xlane.xlu0 %1014
        %vm1016 = vcmp.eq.f32.partialorder %v1013, %v1015
        %v1017 = vsel %vm1016, %v1012, inf
        %1018 = vmin.xlane.f32.xlu0 %v1017
        %v1019 = vpop.xlane.xlu0 %1018
        %v1020 = vcvt.f32.s32 %v1019
        %v1021 = vcvt.f32.s32 %v1015
        %v1022 = vshll.u32 %v1021, 16
        %v1023 = vadd.s32 %v1022, %v1020
        %vm1024 = vcmp.lt.s32.totalorder %v1002, %v1003
        %v1025 = vsel %vm1024, %v1002, %v1003
        %v1026 = vand.u32 %v1025, 65535
        %v1027 = vshra.s32 %v1025, 16
        %v1028 = vcvt.s32.f32 %v1026
        %v1029 = vcvt.s32.f32 %v1027
        %1030 = vmin.xlane.f32.xlu0 %v1029
        %v1031 = vpop.xlane.xlu0 %1030
        %vm1032 = vcmp.eq.f32.partialorder %v1029, %v1031
        %v1033 = vsel %vm1032, %v1028, inf
        %1034 = vmin.xlane.f32.xlu0 %v1033
        %v1035 = vpop.xlane.xlu0 %1034
        %v1036 = vcvt.f32.s32 %v1035
        %v1037 = vcvt.f32.s32 %v1031
        %v1038 = vshll.u32 %v1037, 16
        %v1039 = vadd.s32 %v1038, %v1036
        %vm1040 = vcmp.lt.s32.totalorder %v1004, %v1005
        %v1041 = vsel %vm1040, %v1004, %v1005
        %v1042 = vand.u32 %v1041, 65535
        %v1043 = vshra.s32 %v1041, 16
        %v1044 = vcvt.s32.f32 %v1042
        %v1045 = vcvt.s32.f32 %v1043
        %1046 = vmin.xlane.f32.xlu0 %v1045
        %v1047 = vpop.xlane.xlu0 %1046
        %vm1048 = vcmp.eq.f32.partialorder %v1045, %v1047
        %v1049 = vsel %vm1048, %v1044, inf
        %1050 = vmin.xlane.f32.xlu0 %v1049
        %v1051 = vpop.xlane.xlu0 %1050
        %v1052 = vcvt.f32.s32 %v1051
        %v1053 = vcvt.f32.s32 %v1047
        %v1054 = vshll.u32 %v1053, 16
        %v1055 = vadd.s32 %v1054, %v1052
        %vm1056 = vcmp.lt.s32.totalorder %v1006, %v1007
        %v1057 = vsel %vm1056, %v1006, %v1007
        %v1058 = vand.u32 %v1057, 65535
        %v1059 = vshra.s32 %v1057, 16
        %v1060 = vcvt.s32.f32 %v1058
        %v1061 = vcvt.s32.f32 %v1059
        %1062 = vmin.xlane.f32.xlu0 %v1061
        %v1063 = vpop.xlane.xlu0 %1062
        %vm1064 = vcmp.eq.f32.partialorder %v1061, %v1063
        %v1065 = vsel %vm1064, %v1060, inf
        %1066 = vmin.xlane.f32.xlu0 %v1065
        %v1067 = vpop.xlane.xlu0 %1066
        %v1068 = vcvt.f32.s32 %v1067
        %v1069 = vcvt.f32.s32 %v1063
        %v1070 = vshll.u32 %v1069, 16
        %v1071 = vadd.s32 %v1070, %v1068
        %vm1072 = vcmp.eq.s32.totalorder %v326, %v1023
        %vm1073 = vcmp.eq.s32.totalorder %v327, %v1023
        %vm1074 = vcmp.eq.s32.totalorder %v326, %v1039
        %vm1075 = vcmp.eq.s32.totalorder %v327, %v1039
        %vm1076 = vcmp.eq.s32.totalorder %v326, %v1055
        %vm1077 = vcmp.eq.s32.totalorder %v327, %v1055
        %vm1078 = vcmp.eq.s32.totalorder %v326, %v1071
        %vm1079 = vcmp.eq.s32.totalorder %v327, %v1071
        %vm1080 = vmor %vm948, %vm1072
        %vm1081 = vmor %vm949, %vm1073
        %vm1082 = vmor %vm950, %vm1074
        %vm1083 = vmor %vm951, %vm1075
        %vm1084 = vmor %vm952, %vm1076
        %vm1085 = vmor %vm953, %vm1077
        %vm1086 = vmor %vm954, %vm1078
        %vm1087 = vmor %vm955, %vm1079
        %v1088 = vsel %vm1080, -inf, %v317
        %v1089 = vsel %vm1081, -inf, %v318
        %v1090 = vsel %vm1082, -inf, %v319
        %v1091 = vsel %vm1083, -inf, %v320
        %v1092 = vsel %vm1084, -inf, %v321
        %v1093 = vsel %vm1085, -inf, %v322
        %v1094 = vsel %vm1086, -inf, %v323
        %v1095 = vsel %vm1087, -inf, %v324
        %v1096 = vmax.f32 %v1088, %v1089
        %1097 = vmax.xlane.f32.xlu0 %v1096
        %v1098 = vpop.xlane.xlu0 %1097
        %v1099 = vmax.f32 %v1090, %v1091
        %1100 = vmax.xlane.f32.xlu0 %v1099
        %v1101 = vpop.xlane.xlu0 %1100
        %v1102 = vmax.f32 %v1092, %v1093
        %1103 = vmax.xlane.f32.xlu0 %v1102
        %v1104 = vpop.xlane.xlu0 %1103
        %v1105 = vmax.f32 %v1094, %v1095
        %1106 = vmax.xlane.f32.xlu0 %v1105
        %v1107 = vpop.xlane.xlu0 %1106
        %vm1108 = vcmp.eq.f32.partialorder %v317, %v1098
        %vm1109 = vcmp.eq.f32.partialorder %v318, %v1098
        %vm1110 = vcmp.eq.f32.partialorder %v319, %v1101
        %vm1111 = vcmp.eq.f32.partialorder %v320, %v1101
        %vm1112 = vcmp.eq.f32.partialorder %v321, %v1104
        %vm1113 = vcmp.eq.f32.partialorder %v322, %v1104
        %vm1114 = vcmp.eq.f32.partialorder %v323, %v1107
        %vm1115 = vcmp.eq.f32.partialorder %v324, %v1107
        %vm1116 = vmxor %vm1080, 1
        %vm1117 = vmxor %vm1081, 1
        %vm1118 = vmxor %vm1082, 1
        %vm1119 = vmxor %vm1083, 1
        %vm1120 = vmxor %vm1084, 1
        %vm1121 = vmxor %vm1085, 1
        %vm1122 = vmxor %vm1086, 1
        %vm1123 = vmxor %vm1087, 1
        %vm1124 = vmand %vm1108, %vm1116
        %vm1125 = vmand %vm1109, %vm1117
        %vm1126 = vmand %vm1110, %vm1118
        %vm1127 = vmand %vm1111, %vm1119
        %vm1128 = vmand %vm1112, %vm1120
        %vm1129 = vmand %vm1113, %vm1121
        %vm1130 = vmand %vm1114, %vm1122
        %vm1131 = vmand %vm1115, %vm1123
        %v1132 = vsel %vm1124, %v326, 256
        %v1133 = vsel %vm1125, %v327, 256
        %v1134 = vsel %vm1126, %v326, 256
        %v1135 = vsel %vm1127, %v327, 256
        %v1136 = vsel %vm1128, %v326, 256
        %v1137 = vsel %vm1129, %v327, 256
        %v1138 = vsel %vm1130, %v326, 256
        %v1139 = vsel %vm1131, %v327, 256
        %vm1140 = vcmp.lt.s32.totalorder %v1132, %v1133
        %v1141 = vsel %vm1140, %v1132, %v1133
        %v1142 = vand.u32 %v1141, 65535
        %v1143 = vshra.s32 %v1141, 16
        %v1144 = vcvt.s32.f32 %v1142
        %v1145 = vcvt.s32.f32 %v1143
        %1146 = vmin.xlane.f32.xlu0 %v1145
        %v1147 = vpop.xlane.xlu0 %1146
        %vm1148 = vcmp.eq.f32.partialorder %v1145, %v1147
        %v1149 = vsel %vm1148, %v1144, inf
        %1150 = vmin.xlane.f32.xlu0 %v1149
        %v1151 = vpop.xlane.xlu0 %1150
        %v1152 = vcvt.f32.s32 %v1151
        %v1153 = vcvt.f32.s32 %v1147
        %v1154 = vshll.u32 %v1153, 16
        %v1155 = vadd.s32 %v1154, %v1152
        %vm1156 = vcmp.lt.s32.totalorder %v1134, %v1135
        %v1157 = vsel %vm1156, %v1134, %v1135
        %v1158 = vand.u32 %v1157, 65535
        %v1159 = vshra.s32 %v1157, 16
        %v1160 = vcvt.s32.f32 %v1158
        %v1161 = vcvt.s32.f32 %v1159
        %1162 = vmin.xlane.f32.xlu0 %v1161
        %v1163 = vpop.xlane.xlu0 %1162
        %vm1164 = vcmp.eq.f32.partialorder %v1161, %v1163
        %v1165 = vsel %vm1164, %v1160, inf
        %1166 = vmin.xlane.f32.xlu0 %v1165
        %v1167 = vpop.xlane.xlu0 %1166
        %v1168 = vcvt.f32.s32 %v1167
        %v1169 = vcvt.f32.s32 %v1163
        %v1170 = vshll.u32 %v1169, 16
        %v1171 = vadd.s32 %v1170, %v1168
        %vm1172 = vcmp.lt.s32.totalorder %v1136, %v1137
        %v1173 = vsel %vm1172, %v1136, %v1137
        %v1174 = vand.u32 %v1173, 65535
        %v1175 = vshra.s32 %v1173, 16
        %v1176 = vcvt.s32.f32 %v1174
        %v1177 = vcvt.s32.f32 %v1175
        %1178 = vmin.xlane.f32.xlu0 %v1177
        %v1179 = vpop.xlane.xlu0 %1178
        %vm1180 = vcmp.eq.f32.partialorder %v1177, %v1179
        %v1181 = vsel %vm1180, %v1176, inf
        %1182 = vmin.xlane.f32.xlu0 %v1181
        %v1183 = vpop.xlane.xlu0 %1182
        %v1184 = vcvt.f32.s32 %v1183
        %v1185 = vcvt.f32.s32 %v1179
        %v1186 = vshll.u32 %v1185, 16
        %v1187 = vadd.s32 %v1186, %v1184
        %vm1188 = vcmp.lt.s32.totalorder %v1138, %v1139
        %v1189 = vsel %vm1188, %v1138, %v1139
        %v1190 = vand.u32 %v1189, 65535
        %v1191 = vshra.s32 %v1189, 16
        %v1192 = vcvt.s32.f32 %v1190
        %v1193 = vcvt.s32.f32 %v1191
        %1194 = vmin.xlane.f32.xlu0 %v1193
        %v1195 = vpop.xlane.xlu0 %1194
        %vm1196 = vcmp.eq.f32.partialorder %v1193, %v1195
        %v1197 = vsel %vm1196, %v1192, inf
        %1198 = vmin.xlane.f32.xlu0 %v1197
        %v1199 = vpop.xlane.xlu0 %1198
        %v1200 = vcvt.f32.s32 %v1199
        %v1201 = vcvt.f32.s32 %v1195
        %v1202 = vshll.u32 %v1201, 16
        %v1203 = vadd.s32 %v1202, %v1200
        %vm1204 = vcmp.eq.s32.totalorder %v326, %v1155
        %vm1205 = vcmp.eq.s32.totalorder %v327, %v1155
        %vm1206 = vcmp.eq.s32.totalorder %v326, %v1171
        %vm1207 = vcmp.eq.s32.totalorder %v327, %v1171
        %vm1208 = vcmp.eq.s32.totalorder %v326, %v1187
        %vm1209 = vcmp.eq.s32.totalorder %v327, %v1187
        %vm1210 = vcmp.eq.s32.totalorder %v326, %v1203
        %vm1211 = vcmp.eq.s32.totalorder %v327, %v1203
        %vm1212 = vmor %vm1080, %vm1204
        %vm1213 = vmor %vm1081, %vm1205
        %vm1214 = vmor %vm1082, %vm1206
        %vm1215 = vmor %vm1083, %vm1207
        %vm1216 = vmor %vm1084, %vm1208
        %vm1217 = vmor %vm1085, %vm1209
        %vm1218 = vmor %vm1086, %vm1210
        %vm1219 = vmor %vm1087, %vm1211
        %v1220 = vsel %vm1212, -inf, %v317
        %v1221 = vsel %vm1213, -inf, %v318
        %v1222 = vsel %vm1214, -inf, %v319
        %v1223 = vsel %vm1215, -inf, %v320
        %v1224 = vsel %vm1216, -inf, %v321
        %v1225 = vsel %vm1217, -inf, %v322
        %v1226 = vsel %vm1218, -inf, %v323
        %v1227 = vsel %vm1219, -inf, %v324
        %v1228 = vmax.f32 %v1220, %v1221
        %1229 = vmax.xlane.f32.xlu0 %v1228
        %v1230 = vpop.xlane.xlu0 %1229
        %v1231 = vmax.f32 %v1222, %v1223
        %1232 = vmax.xlane.f32.xlu0 %v1231
        %v1233 = vpop.xlane.xlu0 %1232
        %v1234 = vmax.f32 %v1224, %v1225
        %1235 = vmax.xlane.f32.xlu0 %v1234
        %v1236 = vpop.xlane.xlu0 %1235
        %v1237 = vmax.f32 %v1226, %v1227
        %1238 = vmax.xlane.f32.xlu0 %v1237
        %v1239 = vpop.xlane.xlu0 %1238
        %vm1240 = vcmp.eq.f32.partialorder %v317, %v1230
        %vm1241 = vcmp.eq.f32.partialorder %v318, %v1230
        %vm1242 = vcmp.eq.f32.partialorder %v319, %v1233
        %vm1243 = vcmp.eq.f32.partialorder %v320, %v1233
        %vm1244 = vcmp.eq.f32.partialorder %v321, %v1236
        %vm1245 = vcmp.eq.f32.partialorder %v322, %v1236
        %vm1246 = vcmp.eq.f32.partialorder %v323, %v1239
        %vm1247 = vcmp.eq.f32.partialorder %v324, %v1239
        %vm1248 = vmxor %vm1212, 1
        %vm1249 = vmxor %vm1213, 1
        %vm1250 = vmxor %vm1214, 1
        %vm1251 = vmxor %vm1215, 1
        %vm1252 = vmxor %vm1216, 1
        %vm1253 = vmxor %vm1217, 1
        %vm1254 = vmxor %vm1218, 1
        %vm1255 = vmxor %vm1219, 1
        %vm1256 = vmand %vm1240, %vm1248
        %vm1257 = vmand %vm1241, %vm1249
        %vm1258 = vmand %vm1242, %vm1250
        %vm1259 = vmand %vm1243, %vm1251
        %vm1260 = vmand %vm1244, %vm1252
        %vm1261 = vmand %vm1245, %vm1253
        %vm1262 = vmand %vm1246, %vm1254
        %vm1263 = vmand %vm1247, %vm1255
        %v1264 = vsel %vm1256, %v326, 256
        %v1265 = vsel %vm1257, %v327, 256
        %v1266 = vsel %vm1258, %v326, 256
        %v1267 = vsel %vm1259, %v327, 256
        %v1268 = vsel %vm1260, %v326, 256
        %v1269 = vsel %vm1261, %v327, 256
        %v1270 = vsel %vm1262, %v326, 256
        %v1271 = vsel %vm1263, %v327, 256
        %vm1272 = vcmp.lt.s32.totalorder %v1264, %v1265
        %v1273 = vsel %vm1272, %v1264, %v1265
        %v1274 = vand.u32 %v1273, 65535
        %v1275 = vshra.s32 %v1273, 16
        %v1276 = vcvt.s32.f32 %v1274
        %v1277 = vcvt.s32.f32 %v1275
        %1278 = vmin.xlane.f32.xlu0 %v1277
        %v1279 = vpop.xlane.xlu0 %1278
        %vm1280 = vcmp.eq.f32.partialorder %v1277, %v1279
        %v1281 = vsel %vm1280, %v1276, inf
        %1282 = vmin.xlane.f32.xlu0 %v1281
        %v1283 = vpop.xlane.xlu0 %1282
        %v1284 = vcvt.f32.s32 %v1283
        %v1285 = vcvt.f32.s32 %v1279
        %v1286 = vshll.u32 %v1285, 16
        %v1287 = vadd.s32 %v1286, %v1284
        %vm1288 = vcmp.lt.s32.totalorder %v1266, %v1267
        %v1289 = vsel %vm1288, %v1266, %v1267
        %v1290 = vand.u32 %v1289, 65535
        %v1291 = vshra.s32 %v1289, 16
        %v1292 = vcvt.s32.f32 %v1290
        %v1293 = vcvt.s32.f32 %v1291
        %1294 = vmin.xlane.f32.xlu0 %v1293
        %v1295 = vpop.xlane.xlu0 %1294
        %vm1296 = vcmp.eq.f32.partialorder %v1293, %v1295
        %v1297 = vsel %vm1296, %v1292, inf
        %1298 = vmin.xlane.f32.xlu0 %v1297
        %v1299 = vpop.xlane.xlu0 %1298
        %v1300 = vcvt.f32.s32 %v1299
        %v1301 = vcvt.f32.s32 %v1295
        %v1302 = vshll.u32 %v1301, 16
        %v1303 = vadd.s32 %v1302, %v1300
        %vm1304 = vcmp.lt.s32.totalorder %v1268, %v1269
        %v1305 = vsel %vm1304, %v1268, %v1269
        %v1306 = vand.u32 %v1305, 65535
        %v1307 = vshra.s32 %v1305, 16
        %v1308 = vcvt.s32.f32 %v1306
        %v1309 = vcvt.s32.f32 %v1307
        %1310 = vmin.xlane.f32.xlu0 %v1309
        %v1311 = vpop.xlane.xlu0 %1310
        %vm1312 = vcmp.eq.f32.partialorder %v1309, %v1311
        %v1313 = vsel %vm1312, %v1308, inf
        %1314 = vmin.xlane.f32.xlu0 %v1313
        %v1315 = vpop.xlane.xlu0 %1314
        %v1316 = vcvt.f32.s32 %v1315
        %v1317 = vcvt.f32.s32 %v1311
        %v1318 = vshll.u32 %v1317, 16
        %v1319 = vadd.s32 %v1318, %v1316
        %vm1320 = vcmp.lt.s32.totalorder %v1270, %v1271
        %v1321 = vsel %vm1320, %v1270, %v1271
        %v1322 = vand.u32 %v1321, 65535
        %v1323 = vshra.s32 %v1321, 16
        %v1324 = vcvt.s32.f32 %v1322
        %v1325 = vcvt.s32.f32 %v1323
        %1326 = vmin.xlane.f32.xlu0 %v1325
        %v1327 = vpop.xlane.xlu0 %1326
        %vm1328 = vcmp.eq.f32.partialorder %v1325, %v1327
        %v1329 = vsel %vm1328, %v1324, inf
        %1330 = vmin.xlane.f32.xlu0 %v1329
        %v1331 = vpop.xlane.xlu0 %1330
        %v1332 = vcvt.f32.s32 %v1331
        %v1333 = vcvt.f32.s32 %v1327
        %v1334 = vshll.u32 %v1333, 16
        %v1335 = vadd.s32 %v1334, %v1332
        %vm1336 = vcmp.eq.s32.totalorder %v326, %v1287
        %vm1337 = vcmp.eq.s32.totalorder %v327, %v1287
        %vm1338 = vcmp.eq.s32.totalorder %v326, %v1303
        %vm1339 = vcmp.eq.s32.totalorder %v327, %v1303
        %vm1340 = vcmp.eq.s32.totalorder %v326, %v1319
        %vm1341 = vcmp.eq.s32.totalorder %v327, %v1319
        %vm1342 = vcmp.eq.s32.totalorder %v326, %v1335
        %vm1343 = vcmp.eq.s32.totalorder %v327, %v1335
        %vm1344 = vmor %vm1212, %vm1336
        %vm1345 = vmor %vm1213, %vm1337
        %vm1346 = vmor %vm1214, %vm1338
        %vm1347 = vmor %vm1215, %vm1339
        %vm1348 = vmor %vm1216, %vm1340
        %vm1349 = vmor %vm1217, %vm1341
        %vm1350 = vmor %vm1218, %vm1342
        %vm1351 = vmor %vm1219, %vm1343
        %v1352 = vsel %vm1344, %v251, 0.0
        %v1353 = vsel %vm1345, %v252, 0.0
        %v1354 = vsel %vm1346, %v253, 0.0
        %v1355 = vsel %vm1347, %v254, 0.0
        %v1356 = vsel %vm1348, %v255, 0.0
        %v1357 = vsel %vm1349, %v256, 0.0
        %v1358 = vsel %vm1350, %v257, 0.0
        %v1359 = vsel %vm1351, %v258, 0.0
        %v1360 = vadd.f32 %v1352, %v1353
        %1361 = vadd.xlane.f32.xlu0 %v1360
        %v1362 = vpop.xlane.xlu0 %1361
        %v1363 = vadd.f32 %v1354, %v1355
        %1364 = vadd.xlane.f32.xlu0 %v1363
        %v1365 = vpop.xlane.xlu0 %1364
        %v1366 = vadd.f32 %v1356, %v1357
        %1367 = vadd.xlane.f32.xlu0 %v1366
        %v1368 = vpop.xlane.xlu0 %1367
        %v1369 = vadd.f32 %v1358, %v1359
        %1370 = vadd.xlane.f32.xlu0 %v1369
        %v1371 = vpop.xlane.xlu0 %1370
        %v1372 = vmul.f32 %v1362, 0.125
        %v1373 = vmul.f32 %v1365, 0.125
        %v1374 = vmul.f32 %v1368, 0.125
        %v1375 = vmul.f32 %v1371, 0.125
        %vm1376 = vcmask 7168
        %1377 = vst.msk [vmem:[%s250] sm:$0xff] %vm1376, %v1372
        %1378 = vst.msk [vmem:[%s250 + $0x8] sm:$0xff] %vm1376, %v1373
        %1379 = vst.msk [vmem:[%s250 + $0x10] sm:$0xff] %vm1376, %v1374
        %1380 = vst.msk [vmem:[%s250 + $0x18] sm:$0xff] %vm1376, %v1375
        %p1381 = scmp.lt.s32.totalorder %s20, 1
        %s1382 = scalar_select %p1381, %s20, 1
        %s1383 = smul.addr %s1382, 4
        %s1384 = smul.addr %s1383, 8
        %s1385 = scalar_lea.vmem %s3, %s1384
        // Predicated region
        $region41: #{tpu_custom_call.1} parent=31 // pred_check
          %p1386 = pneg %p116
        $region42: #{tpu_custom_call.1} parent=31 // pred_check_branch
          %1388 = sbr.rel (%p1386) target = $region44
        $region43: #{tpu_custom_call.1} parent=31 // pred_region
          _
        $region44: #{tpu_custom_call.1} parent=31 // pred_fallthru
          _
      $region32: #{tpu_custom_call.1} parent=5 // pred_fallthru
        _
      %p1389 = scmp.le.s32.totalorder 2, %s15
      // Predicated region
      $region45: #{tpu_custom_call.1} parent=5 // pred_check
        %p1390 = pneg %p1389
      $region46: #{tpu_custom_call.1} parent=5 // pred_check_branch
        %1392 = sbr.rel (%p1390) target = $region48
      $region47: #{tpu_custom_call.1} parent=5 // pred_region
        %s1393 = ssub.s32 %s15, 2
        // Predicated region
        $region49: #{tpu_custom_call.1} parent=47 // pred_check
          %p1394 = pneg %p122
        $region50: #{tpu_custom_call.1} parent=47 // pred_check_branch
          %1396 = sbr.rel (%p1394) target = $region52
        $region51: #{tpu_custom_call.1} parent=47 // pred_region
          %p1397 = scmp.lt.s32.totalorder %s21, 1
          %s1398 = scalar_select %p1397, %s21, 1
          %s1399 = smul.addr %s1398, 4
          %s1400 = smul.addr %s1399, 8
          %s1401 = scalar_lea.vmem %s3, %s1400
        $region52: #{tpu_custom_call.1} parent=47 // pred_fallthru
          _
      $region48: #{tpu_custom_call.1} parent=5 // pred_fallthru
        _
    $region6: #{tpu_custom_call.1} parent=1 // loop_footer
      %s19 = sadd.s32 1, %s15
    $region7: #{tpu_custom_call.1} parent=1 // loop_footer_branch
      %14 = sbr.rel target = $region3
    $region8: #{tpu_custom_call.1} parent=1 // loop_exit
      _
    %1402 = vsyncpa [#allocation3], 1
    %s1403 = scalar_lea.sflag [#allocation3], 1
    %1404 = vsyncpa %s1403, 1
    %1405 = vsyncpa [#allocation5], 1
    %s1406 = scalar_lea.sflag [#allocation5], 1
    %1407 = vsyncpa %s1406, 1

</llo_original>
